<compile_context>
chip_gen: v7x
topology: tpu7x:2x2x1
jax: 0.10.0
libtpu: 0.0.40
codegen_flags: <defaults>
</compile_context>

<pallas_src>
import functools

import jax
import jax.numpy as jnp
import numpy as np
from jax.experimental import pallas as pl
from jax.experimental.pallas import tpu as pltpu


# ----------------------------------------------------------------------------
# Fused kernel body (one grid step = Nb batch elements, everything in VMEM)
# ----------------------------------------------------------------------------
def _fused_kernel(x_ref, T_ref, bconv_ref, P_ref, shift_ref,
                  w1_ref, b1_ref, w2_ref, b2_ref, o_ref, *, H, Nb, Fp, hidden):
    # x_ref: (H*Nb, W), rows ordered h-major inside the batch tile (row = h*Nb+n)
    x2d = x_ref[...]

    # All three temporal-conv branches at once: x @ stacked Toeplitz (MXU, K=W).
    conv = jnp.dot(x2d, T_ref[...], preferred_element_type=jnp.float32)
    conv = jnp.maximum(conv + bconv_ref[...], 0.0)            # conv bias + ReLU

    # AvgPool2d((1,16),(1,16)) with the BN scale folded into P (MXU matmul);
    # BN shift is added afterwards.
    pooled = (jnp.dot(conv, P_ref[...], preferred_element_type=jnp.float32)
              + shift_ref[...])                               # (H*Nb, Fp)

    # fc1 over the flattened features == sum over h of per-h matmuls.  w1 rows
    # were permuted on the host so this matches PyTorch's .view(N, -1) order.
    acc = jnp.zeros((Nb, hidden), jnp.float32)
    for h in range(H):                                        # H is small & static
        acc = acc + jnp.dot(pooled[h * Nb:(h + 1) * Nb, :],
                            w1_ref[h * Fp:(h + 1) * Fp, :],
                            preferred_element_type=jnp.float32)
    h1 = jnp.maximum(acc + b1_ref[...], 0.0)                  # ReLU (+Dropout=id, eval)

    z = jnp.dot(h1, w2_ref[...], preferred_element_type=jnp.float32) + b2_ref[...]
    m = jnp.max(z, axis=-1, keepdims=True)                    # LogSoftmax(dim=1)
    e = jnp.exp(z - m)
    o_ref[...] = z - m - jnp.log(jnp.sum(e, axis=-1, keepdims=True))


# ----------------------------------------------------------------------------
# Host-side one-time parameter packing (Toeplitz conv matrix, pooling matrix
# with folded BN scale, permuted fc1 weights).
# ----------------------------------------------------------------------------
def prepare_tception_params(kernel_sizes, conv_w, conv_b, bn_scale, bn_shift,
                            w1, b1, w2, b2, *, H, W, num_T):
    Lps = [(W - k + 1) // 16 for k in kernel_sizes]
    Lcs = [lp * 16 for lp in Lps]          # only the pooled conv region is needed
    L_total = sum(Lps)
    C_total = num_T * sum(Lcs)
    Fp = num_T * L_total
    hidden = w1.shape[1]

    T = np.zeros((W, C_total), np.float32)          # stacked Toeplitz conv taps
    b_conv = np.zeros((1, C_total), np.float32)     # conv bias per conv column
    P = np.zeros((C_total, Fp), np.float32)         # avg-pool (1/16) * BN scale
    shift_cols = np.zeros((1, Fp), np.float32)      # BN shift per pooled column

    scale = np.asarray(bn_scale, np.float32).reshape(num_T)
    shift = np.asarray(bn_shift, np.float32).reshape(num_T)

    off_c, off_p = 0, 0
    for w_b, b_b, k, Lc, Lp in zip(conv_w, conv_b, kernel_sizes, Lcs, Lps):
        w_np = np.asarray(w_b, np.float32)                      # (num_T, k)
        b_np = np.asarray(b_b, np.float32).reshape(num_T)
        for c in range(num_T):
            for l in range(Lc):                                  # conv position
                col = off_c + c * Lc + l
                T[l:l + k, col] = w_np[c]
                b_conv[0, col] = b_np[c]
            for p in range(Lp):                                  # pooled position
                pcol = off_p + c * Lp + p
                P[off_c + c * Lc + 16 * p: off_c + c * Lc + 16 * (p + 1), pcol] = (
                    scale[c] / 16.0)
                shift_cols[0, pcol] = shift[c]
        off_c += num_T * Lc
        off_p += num_T * Lp

    # Permute fc1 rows: kernel-native feature order is (h, branch, channel, p);
    # PyTorch's flatten of (N, num_T, H, L_total) is (channel, h, l_total).
    w1_np = np.asarray(w1, np.float32)                          # (num_T*H*L_total, hidden)
    w1_stk = np.zeros((H * Fp, hidden), np.float32)
    for h in range(H):
        off_p, lp_off = 0, 0
        for Lp in Lps:
            for c in range(num_T):
                for p in range(Lp):
                    pool_col = off_p + c * Lp + p
                    flat = c * (H * L_total) + h * L_total + lp_off + p
                    w1_stk[h * Fp + pool_col, :] = w1_np[flat, :]
            off_p += num_T * Lp
            lp_off += Lp

    return dict(
        T=jnp.asarray(T), b_conv=jnp.asarray(b_conv),
        P=jnp.asarray(P), shift=jnp.asarray(shift_cols),
        w1_stk=jnp.asarray(w1_stk), b1=jnp.asarray(b1, jnp.float32),
        w2=jnp.asarray(w2, jnp.float32), b2=jnp.asarray(b2, jnp.float32),
    )


# ----------------------------------------------------------------------------
# Forward: one pallas_call over batch tiles of Nb elements
# ----------------------------------------------------------------------------
def tception_forward(x_nchw, packed, *, Nb=8):
    N, _, H, W = x_nchw.shape
    C_total = packed["T"].shape[1]
    Fp = packed["P"].shape[1]
    hidden = packed["w1_stk"].shape[1]
    num_classes = packed["w2"].shape[1]

    n_tiles = max(1, (N + Nb - 1) // Nb)
    N_pad = n_tiles * Nb

    x = x_nchw[:, 0]                                            # (N, H, W)
    if N_pad != N:
        x = jnp.pad(x, ((0, N_pad - N), (0, 0), (0, 0)))
    # Rows ordered (tile, h, n_local) so each batch tile is a contiguous
    # (H*Nb, W) lane-dense slab — no in-kernel relayout needed.
    x = (x.reshape(n_tiles, Nb, H, W)
          .transpose(0, 2, 1, 3)
          .reshape(n_tiles * H * Nb, W))

    kern = functools.partial(_fused_kernel, H=H, Nb=Nb, Fp=Fp, hidden=hidden)
    out = pl.pallas_call(
        kern,
        out_shape=jax.ShapeDtypeStruct((N_pad, num_classes), jnp.float32),
        grid=(n_tiles,),
        in_specs=[
            pl.BlockSpec((H * Nb, W), lambda b: (b, 0)),
            pl.BlockSpec((W, C_total), lambda b: (0, 0)),
            pl.BlockSpec((1, C_total), lambda b: (0, 0)),
            pl.BlockSpec((C_total, Fp), lambda b: (0, 0)),
            pl.BlockSpec((1, Fp), lambda b: (0, 0)),
            pl.BlockSpec((H * Fp, hidden), lambda b: (0, 0)),
            pl.BlockSpec((1, hidden), lambda b: (0, 0)),
            pl.BlockSpec((hidden, num_classes), lambda b: (0, 0)),
            pl.BlockSpec((1, num_classes), lambda b: (0, 0)),
        ],
        out_specs=pl.BlockSpec((Nb, num_classes), lambda b: (b, 0)),
        compiler_params=pltpu.CompilerParams(dimension_semantics=("parallel",)),
    )(x, packed["T"], packed["b_conv"], packed["P"], packed["shift"],
      packed["w1_stk"], packed["b1"], packed["w2"], packed["b2"])
    return out[:N]


# ----------------------------------------------------------------------------
# Pure-JAX reference (faithful to the PyTorch module, no Pallas) for validation
# ----------------------------------------------------------------------------
def ref_forward(x_nchw, params):
    x = x_nchw[:, 0]
    N, H, W = x.shape
    outs = []
    for w, b, k in zip(params["conv_w"], params["conv_b"], params["kernel_sizes"]):
        num_T = w.shape[0]
        Lc = W - k + 1
        Lp = Lc // 16
        conv = jnp.zeros((N, num_T, H, Lc), jnp.float32)
        for j in range(k):
            conv = conv + x[:, None, :, j:j + Lc] * w[:, j][None, :, None, None]
        conv = jnp.maximum(conv + b[None, :, :, None], 0.0)
        pooled = conv[..., :Lp * 16].reshape(N, num_T, H, Lp, 16).mean(-1)
        pooled = (pooled * params["bn_scale"][None, :, :, None]
                  + params["bn_shift"][None, :, :, None])
        outs.append(pooled)
    feat = jnp.concatenate(outs, axis=-1).reshape(N, -1)
    h = jnp.maximum(jnp.dot(feat, params["w1"],
                            precision=jax.lax.Precision.HIGHEST) + params["b1"], 0.0)
    z = jnp.dot(h, params["w2"],
                precision=jax.lax.Precision.HIGHEST) + params["b2"]
    return jax.nn.log_softmax(z, axis=-1)


if __name__ == "__main__":
    # Module hyperparameters (small but shape-consistent with the PyTorch code).
    num_classes = 3
    input_size = (4, 128)        # (EEG channels H, time samples W)
    sampling_rate = 64
    num_T = 4
    hidden = 32
    N = 2                        # batch

    H, W = input_size
    kernel_sizes = [int(0.5 * sampling_rate),      # 32
                    int(0.25 * sampling_rate),     # 16
                    int(0.125 * sampling_rate)]    # 8
    Lps = [(W - k + 1) // 16 for k in kernel_sizes]
    L_total = sum(Lps)
    F = num_T * H * L_total      # flattened feature size (== get_size()[1])

    key = jax.random.PRNGKey(0)
    ks = jax.random.split(key, 16)

    # Deterministic synthetic parameters (shapes match the nn.Module).
    conv_w = [jax.random.normal(ks[i], (num_T, k), jnp.float32) * 0.1
              for i, k in enumerate(kernel_sizes)]
    conv_b = [jax.random.normal(ks[3 + i], (num_T, 1), jnp.float32) * 0.1
              for i in range(3)]
    bn_gamma = 1.0 + 0.1 * jax.random.normal(ks[6], (num_T, 1), jnp.float32)
    bn_beta = 0.1 * jax.random.normal(ks[7], (num_T, 1), jnp.float32)
    bn_mean = 0.1 * jax.random.normal(ks[8], (num_T, 1), jnp.float32)
    bn_var = 0.5 + jax.random.uniform(ks[9], (num_T, 1), jnp.float32)
    eps = 1e-5
    bn_scale = bn_gamma / jnp.sqrt(bn_var + eps)
    bn_shift = bn_beta - bn_mean * bn_scale

    w1 = jax.random.normal(ks[10], (F, hidden), jnp.float32) / jnp.sqrt(F)
    b1 = 0.1 * jax.random.normal(ks[11], (1, hidden), jnp.float32)
    w2 = jax.random.normal(ks[12], (hidden, num_classes), jnp.float32) / jnp.sqrt(hidden)
    b2 = 0.1 * jax.random.normal(ks[13], (1, num_classes), jnp.float32)

    params = dict(kernel_sizes=kernel_sizes, conv_w=conv_w, conv_b=conv_b,
                  bn_scale=bn_scale, bn_shift=bn_shift,
                  w1=w1, b1=b1, w2=w2, b2=b2)

    # One-time host-side packing of the fused-kernel parameters.
    packed = prepare_tception_params(kernel_sizes, conv_w, conv_b,
                                     bn_scale, bn_shift, w1, b1, w2, b2,
                                     H=H, W=W, num_T=num_T)

    # Input (N, 1, H, W) like PyTorch NCHW.
    x = jax.random.normal(ks[14], (N, 1, H, W), jnp.float32)

    fwd = jax.jit(tception_forward)
    out = jax.block_until_ready(fwd(x, packed))
    ref = jax.block_until_ready(ref_forward(x, params))

    assert out.shape == (N, num_classes), out.shape
    # Tolerance allows for MXU f32 pass/accumulation-order differences vs the
    # elementwise-f32 reference; any structural/indexing bug would be O(1) off.
    assert jnp.allclose(out, ref, atol=1e-3, rtol=1e-3), (out, ref)
    print("KERNEL_OK")
</pallas_src>

<mosaic_0001>
module attributes {stable_mosaic.version = 11 : i64} {
  func.func @_fused_kernel(%arg0: i32, %arg1: memref<32x128xf32, #tpu.memory_space<vmem>>, %arg2: memref<128x1280xf32, #tpu.memory_space<vmem>>, %arg3: memref<1x1280xf32, #tpu.memory_space<vmem>>, %arg4: memref<1280x80xf32, #tpu.memory_space<vmem>>, %arg5: memref<1x80xf32, #tpu.memory_space<vmem>>, %arg6: memref<320x32xf32, #tpu.memory_space<vmem>>, %arg7: memref<1x32xf32, #tpu.memory_space<vmem>>, %arg8: memref<32x3xf32, #tpu.memory_space<vmem>>, %arg9: memref<1x3xf32, #tpu.memory_space<vmem>>, %arg10: memref<8x3xf32, #tpu.memory_space<vmem>>) attributes {dimension_semantics = [#tpu.dimension_semantics<parallel>], iteration_bounds = array<i64: 1>, scalar_prefetch = 0 : i64, scratch_operands = 0 : i64, tpu.core_type = #tpu.core_type<tc>, window_params = [{transform_indices = @transform_0, window_bounds = array<i64: 32, 128>}, {pipeline_mode = #tpu.pipeline_mode<synchronous>, transform_indices = @transform_1, window_bounds = array<i64: 128, 1280>}, {pipeline_mode = #tpu.pipeline_mode<synchronous>, transform_indices = @transform_2, window_bounds = array<i64: 1, 1280>}, {pipeline_mode = #tpu.pipeline_mode<synchronous>, transform_indices = @transform_3, window_bounds = array<i64: 1280, 80>}, {pipeline_mode = #tpu.pipeline_mode<synchronous>, transform_indices = @transform_4, window_bounds = array<i64: 1, 80>}, {pipeline_mode = #tpu.pipeline_mode<synchronous>, transform_indices = @transform_5, window_bounds = array<i64: 320, 32>}, {pipeline_mode = #tpu.pipeline_mode<synchronous>, transform_indices = @transform_6, window_bounds = array<i64: 1, 32>}, {pipeline_mode = #tpu.pipeline_mode<synchronous>, transform_indices = @transform_7, window_bounds = array<i64: 32, 3>}, {pipeline_mode = #tpu.pipeline_mode<synchronous>, transform_indices = @transform_8, window_bounds = array<i64: 1, 3>}, {transform_indices = @transform_9, window_bounds = array<i64: 8, 3>}]} {
    %c0 = arith.constant 0 : index
    %c0_0 = arith.constant 0 : index
    %0 = vector.load %arg1[%c0, %c0_0] : memref<32x128xf32, #tpu.memory_space<vmem>>, vector<32x128xf32>
    %c0_1 = arith.constant 0 : index
    %c0_2 = arith.constant 0 : index
    %1 = vector.load %arg2[%c0_1, %c0_2] : memref<128x1280xf32, #tpu.memory_space<vmem>>, vector<128x1280xf32>
    %cst = arith.constant dense<0.000000e+00> : vector<32x1280xf32>
    %2 = tpu.matmul %0, %1, %cst {dimension_numbers = #tpu.dot_dimension_numbers<[1], [0], [0], [1], [0, 0, 1, 1], [], []>} : vector<32x128xf32>, vector<128x1280xf32>, vector<32x1280xf32> -> vector<32x1280xf32>
    %c0_3 = arith.constant 0 : index
    %c0_4 = arith.constant 0 : index
    %3 = vector.load %arg3[%c0_3, %c0_4] : memref<1x1280xf32, #tpu.memory_space<vmem>>, vector<1x1280xf32>
    %4 = vector.broadcast %3 : vector<1x1280xf32> to vector<32x1280xf32>
    %5 = arith.addf %2, %4 : vector<32x1280xf32>
    %cst_5 = arith.constant 0.000000e+00 : f32
    %6 = vector.broadcast %cst_5 : f32 to vector<32x1280xf32>
    %7 = arith.maximumf %5, %6 : vector<32x1280xf32>
    %c0_6 = arith.constant 0 : index
    %c0_7 = arith.constant 0 : index
    %8 = vector.load %arg4[%c0_6, %c0_7] : memref<1280x80xf32, #tpu.memory_space<vmem>>, vector<1280x80xf32>
    %cst_8 = arith.constant dense<0.000000e+00> : vector<32x80xf32>
    %9 = tpu.matmul %7, %8, %cst_8 {dimension_numbers = #tpu.dot_dimension_numbers<[1], [0], [0], [1], [0, 0, 1, 1], [], []>} : vector<32x1280xf32>, vector<1280x80xf32>, vector<32x80xf32> -> vector<32x80xf32>
    %c0_9 = arith.constant 0 : index
    %c0_10 = arith.constant 0 : index
    %10 = vector.load %arg5[%c0_9, %c0_10] : memref<1x80xf32, #tpu.memory_space<vmem>>, vector<1x80xf32>
    %11 = vector.broadcast %10 : vector<1x80xf32> to vector<32x80xf32>
    %12 = arith.addf %9, %11 : vector<32x80xf32>
    %cst_11 = arith.constant 0.000000e+00 : f32
    %13 = vector.broadcast %cst_11 : f32 to vector<8x32xf32>
    %14 = vector.extract_strided_slice %12 {offsets = [0, 0], sizes = [8, 80], strides = [1, 1]} : vector<32x80xf32> to vector<8x80xf32>
    %c0_12 = arith.constant 0 : index
    %c0_13 = arith.constant 0 : index
    %15 = vector.load %arg6[%c0_12, %c0_13] : memref<320x32xf32, #tpu.memory_space<vmem>>, vector<80x32xf32>
    %cst_14 = arith.constant dense<0.000000e+00> : vector<8x32xf32>
    %16 = tpu.matmul %14, %15, %cst_14 {dimension_numbers = #tpu.dot_dimension_numbers<[1], [0], [0], [1], [0, 0, 1, 1], [], []>} : vector<8x80xf32>, vector<80x32xf32>, vector<8x32xf32> -> vector<8x32xf32>
    %17 = arith.addf %13, %16 : vector<8x32xf32>
    %18 = vector.extract_strided_slice %12 {offsets = [8, 0], sizes = [8, 80], strides = [1, 1]} : vector<32x80xf32> to vector<8x80xf32>
    %c80 = arith.constant 80 : index
    %c0_15 = arith.constant 0 : index
    %19 = vector.load %arg6[%c80, %c0_15] : memref<320x32xf32, #tpu.memory_space<vmem>>, vector<80x32xf32>
    %cst_16 = arith.constant dense<0.000000e+00> : vector<8x32xf32>
    %20 = tpu.matmul %18, %19, %cst_16 {dimension_numbers = #tpu.dot_dimension_numbers<[1], [0], [0], [1], [0, 0, 1, 1], [], []>} : vector<8x80xf32>, vector<80x32xf32>, vector<8x32xf32> -> vector<8x32xf32>
    %21 = arith.addf %17, %20 : vector<8x32xf32>
    %22 = vector.extract_strided_slice %12 {offsets = [16, 0], sizes = [8, 80], strides = [1, 1]} : vector<32x80xf32> to vector<8x80xf32>
    %c160 = arith.constant 160 : index
    %c0_17 = arith.constant 0 : index
    %23 = vector.load %arg6[%c160, %c0_17] : memref<320x32xf32, #tpu.memory_space<vmem>>, vector<80x32xf32>
    %cst_18 = arith.constant dense<0.000000e+00> : vector<8x32xf32>
    %24 = tpu.matmul %22, %23, %cst_18 {dimension_numbers = #tpu.dot_dimension_numbers<[1], [0], [0], [1], [0, 0, 1, 1], [], []>} : vector<8x80xf32>, vector<80x32xf32>, vector<8x32xf32> -> vector<8x32xf32>
    %25 = arith.addf %21, %24 : vector<8x32xf32>
    %26 = vector.extract_strided_slice %12 {offsets = [24, 0], sizes = [8, 80], strides = [1, 1]} : vector<32x80xf32> to vector<8x80xf32>
    %c240 = arith.constant 240 : index
    %c0_19 = arith.constant 0 : index
    %27 = vector.load %arg6[%c240, %c0_19] : memref<320x32xf32, #tpu.memory_space<vmem>>, vector<80x32xf32>
    %cst_20 = arith.constant dense<0.000000e+00> : vector<8x32xf32>
    %28 = tpu.matmul %26, %27, %cst_20 {dimension_numbers = #tpu.dot_dimension_numbers<[1], [0], [0], [1], [0, 0, 1, 1], [], []>} : vector<8x80xf32>, vector<80x32xf32>, vector<8x32xf32> -> vector<8x32xf32>
    %29 = arith.addf %25, %28 : vector<8x32xf32>
    %c0_21 = arith.constant 0 : index
    %c0_22 = arith.constant 0 : index
    %30 = vector.load %arg7[%c0_21, %c0_22] : memref<1x32xf32, #tpu.memory_space<vmem>>, vector<1x32xf32>
    %31 = vector.broadcast %30 : vector<1x32xf32> to vector<8x32xf32>
    %32 = arith.addf %29, %31 : vector<8x32xf32>
    %cst_23 = arith.constant 0.000000e+00 : f32
    %33 = vector.broadcast %cst_23 : f32 to vector<8x32xf32>
    %34 = arith.maximumf %32, %33 : vector<8x32xf32>
    %c0_24 = arith.constant 0 : index
    %c0_25 = arith.constant 0 : index
    %35 = vector.load %arg8[%c0_24, %c0_25] : memref<32x3xf32, #tpu.memory_space<vmem>>, vector<32x3xf32>
    %cst_26 = arith.constant dense<0.000000e+00> : vector<8x3xf32>
    %36 = tpu.matmul %34, %35, %cst_26 {dimension_numbers = #tpu.dot_dimension_numbers<[1], [0], [0], [1], [0, 0, 1, 1], [], []>} : vector<8x32xf32>, vector<32x3xf32>, vector<8x3xf32> -> vector<8x3xf32>
    %c0_27 = arith.constant 0 : index
    %c0_28 = arith.constant 0 : index
    %37 = vector.load %arg9[%c0_27, %c0_28] : memref<1x3xf32, #tpu.memory_space<vmem>>, vector<1x3xf32>
    %38 = vector.broadcast %37 : vector<1x3xf32> to vector<8x3xf32>
    %39 = arith.addf %36, %38 : vector<8x3xf32>
    %cst_29 = arith.constant dense<0xFF800000> : vector<8xf32>
    %40 = vector.multi_reduction <maximumf>, %39, %cst_29 [1] : vector<8x3xf32> to vector<8xf32>
    %41 = vector.shape_cast %40 : vector<8xf32> to vector<8x1xf32>
    %42 = vector.broadcast %41 : vector<8x1xf32> to vector<8x3xf32>
    %43 = arith.subf %39, %42 : vector<8x3xf32>
    %44 = math.exp %43 : vector<8x3xf32>
    %45 = vector.broadcast %41 : vector<8x1xf32> to vector<8x3xf32>
    %46 = arith.subf %39, %45 : vector<8x3xf32>
    %cst_30 = arith.constant dense<0.000000e+00> : vector<8xf32>
    %47 = vector.multi_reduction <add>, %44, %cst_30 [1] : vector<8x3xf32> to vector<8xf32>
    %48 = vector.shape_cast %47 : vector<8xf32> to vector<8x1xf32>
    %49 = math.log %48 : vector<8x1xf32>
    %50 = vector.broadcast %49 : vector<8x1xf32> to vector<8x3xf32>
    %51 = arith.subf %46, %50 : vector<8x3xf32>
    %c0_31 = arith.constant 0 : index
    %c0_32 = arith.constant 0 : index
    %52 = vector.load %arg10[%c0_31, %c0_32] : memref<8x3xf32, #tpu.memory_space<vmem>>, vector<8x3xf32>
    tpu.vector_store %arg10[%c0_31, %c0_32], %51 {strides = array<i32>} : memref<8x3xf32, #tpu.memory_space<vmem>>, vector<8x3xf32>,
    return
  }
  func.func @transform_0(%arg0: i32) -> (i32, i32) {
    %c0_i32 = arith.constant 0 : i32
    %c0_i32_0 = arith.constant 0 : i32
    return %arg0, %c0_i32 : i32, i32
  }
  func.func @transform_1(%arg0: i32) -> (i32, i32) {
    %c0_i32 = arith.constant 0 : i32
    %c0_i32_0 = arith.constant 0 : i32
    %c0_i32_1 = arith.constant 0 : i32
    return %c0_i32, %c0_i32_0 : i32, i32
  }
  func.func @transform_2(%arg0: i32) -> (i32, i32) {
    %c0_i32 = arith.constant 0 : i32
    %c0_i32_0 = arith.constant 0 : i32
    %c0_i32_1 = arith.constant 0 : i32
    return %c0_i32, %c0_i32_0 : i32, i32
  }
  func.func @transform_3(%arg0: i32) -> (i32, i32) {
    %c0_i32 = arith.constant 0 : i32
    %c0_i32_0 = arith.constant 0 : i32
    %c0_i32_1 = arith.constant 0 : i32
    return %c0_i32, %c0_i32_0 : i32, i32
  }
  func.func @transform_4(%arg0: i32) -> (i32, i32) {
    %c0_i32 = arith.constant 0 : i32
    %c0_i32_0 = arith.constant 0 : i32
    %c0_i32_1 = arith.constant 0 : i32
    return %c0_i32, %c0_i32_0 : i32, i32
  }
  func.func @transform_5(%arg0: i32) -> (i32, i32) {
    %c0_i32 = arith.constant 0 : i32
    %c0_i32_0 = arith.constant 0 : i32
    %c0_i32_1 = arith.constant 0 : i32
    return %c0_i32, %c0_i32_0 : i32, i32
  }
  func.func @transform_6(%arg0: i32) -> (i32, i32) {
    %c0_i32 = arith.constant 0 : i32
    %c0_i32_0 = arith.constant 0 : i32
    %c0_i32_1 = arith.constant 0 : i32
    return %c0_i32, %c0_i32_0 : i32, i32
  }
  func.func @transform_7(%arg0: i32) -> (i32, i32) {
    %c0_i32 = arith.constant 0 : i32
    %c0_i32_0 = arith.constant 0 : i32
    %c0_i32_1 = arith.constant 0 : i32
    return %c0_i32, %c0_i32_0 : i32, i32
  }
  func.func @transform_8(%arg0: i32) -> (i32, i32) {
    %c0_i32 = arith.constant 0 : i32
    %c0_i32_0 = arith.constant 0 : i32
    %c0_i32_1 = arith.constant 0 : i32
    return %c0_i32, %c0_i32_0 : i32, i32
  }
  func.func @transform_9(%arg0: i32) -> (i32, i32) {
    %c0_i32 = arith.constant 0 : i32
    %c0_i32_0 = arith.constant 0 : i32
    return %arg0, %c0_i32 : i32, i32
  }
}

</mosaic_0001>

<llo_original>
// kernel: tception_forward.1
$region0: #{tception_forward.1}
  #allocation0 [shape = 'u32[]', space=smem, size = 0x4, offset = 0x4, fixed_abs, tag = 'smem constant byte address 0x4 - core index']
  #allocation1 [shape = 'u32[144,128]{1,0:T(1,128)}', space=vmem, size = 0x12000, scoped, tag = 'internal scratch']
  %s0 = inlined_call_operand.vmem [shape: f32[32,128], index: 0, kind: input, shape index: {}]
  %s1 = inlined_call_operand.vmem [shape: f32[128,1280], index: 1, kind: input, shape index: {}]
  %s2 = inlined_call_operand.vmem [shape: f32[1,1280], index: 2, kind: input, shape index: {}]
  %s3 = inlined_call_operand.vmem [shape: f32[1280,80], index: 3, kind: input, shape index: {}]
  %s4 = inlined_call_operand.vmem [shape: f32[1,80], index: 4, kind: input, shape index: {}]
  %s5 = inlined_call_operand.vmem [shape: f32[320,32], index: 5, kind: input, shape index: {}]
  %s6 = inlined_call_operand.vmem [shape: f32[1,32], index: 6, kind: input, shape index: {}]
  %s7 = inlined_call_operand.vmem [shape: f32[32,3], index: 7, kind: input, shape index: {}]
  %s8 = inlined_call_operand.vmem [shape: f32[1,3], index: 8, kind: input, shape index: {}]
  %s9 = inlined_call_operand.vmem [shape: f32[8,3], index: 9, kind: output, shape index: {}]
  %s10 = sld [smem:[#allocation0]]
  $region46: #{tception_forward.1} parent=0
    _
  %s12 = ssub.s32 1, %s10
  %s13 = scalar_select 0, %s12, %s10
  // Predicated region
  $region2: #{tception_forward.1} parent=0 // pred_check
    _
  $region3: #{tception_forward.1} parent=0 // pred_check_branch
    %15 = sbr.rel (0) target = $region5
  $region4: #{tception_forward.1} parent=0 // pred_region
    _
  $region5: #{tception_forward.1} parent=0 // pred_fallthru
    _
  // Predicated region
  $region6: #{tception_forward.1} parent=0 // pred_check
    _
  $region7: #{tception_forward.1} parent=0 // pred_check_branch
    %17 = sbr.rel (0) target = $region9
  $region8: #{tception_forward.1} parent=0 // pred_region
    _
  $region9: #{tception_forward.1} parent=0 // pred_fallthru
    _
  // Predicated region
  $region10: #{tception_forward.1} parent=0 // pred_check
    _
  $region11: #{tception_forward.1} parent=0 // pred_check_branch
    %19 = sbr.rel (0) target = $region13
  $region12: #{tception_forward.1} parent=0 // pred_region
    _
  $region13: #{tception_forward.1} parent=0 // pred_fallthru
    _
  // Predicated region
  $region14: #{tception_forward.1} parent=0 // pred_check
    _
  $region15: #{tception_forward.1} parent=0 // pred_check_branch
    %21 = sbr.rel (0) target = $region17
  $region16: #{tception_forward.1} parent=0 // pred_region
    _
  $region17: #{tception_forward.1} parent=0 // pred_fallthru
    _
  // Predicated region
  $region18: #{tception_forward.1} parent=0 // pred_check
    _
  $region19: #{tception_forward.1} parent=0 // pred_check_branch
    %23 = sbr.rel (0) target = $region21
  $region20: #{tception_forward.1} parent=0 // pred_region
    _
  $region21: #{tception_forward.1} parent=0 // pred_fallthru
    _
  // Predicated region
  $region22: #{tception_forward.1} parent=0 // pred_check
    _
  $region23: #{tception_forward.1} parent=0 // pred_check_branch
    %25 = sbr.rel (0) target = $region25
  $region24: #{tception_forward.1} parent=0 // pred_region
    _
  $region25: #{tception_forward.1} parent=0 // pred_fallthru
    _
  // Predicated region
  $region26: #{tception_forward.1} parent=0 // pred_check
    _
  $region27: #{tception_forward.1} parent=0 // pred_check_branch
    %27 = sbr.rel (0) target = $region29
  $region28: #{tception_forward.1} parent=0 // pred_region
    _
  $region29: #{tception_forward.1} parent=0 // pred_fallthru
    _
  // Predicated region
  $region30: #{tception_forward.1} parent=0 // pred_check
    _
  $region31: #{tception_forward.1} parent=0 // pred_check_branch
    %29 = sbr.rel (0) target = $region33
  $region32: #{tception_forward.1} parent=0 // pred_region
    _
  $region33: #{tception_forward.1} parent=0 // pred_fallthru
    _
  // Predicated region
  $region34: #{tception_forward.1} parent=0 // pred_check
    _
  $region35: #{tception_forward.1} parent=0 // pred_check_branch
    %31 = sbr.rel (0) target = $region37
  $region36: #{tception_forward.1} parent=0 // pred_region
    _
  $region37: #{tception_forward.1} parent=0 // pred_fallthru
    _
  %v32 = vld [vmem:[%s0] sm:$0xff]
  %v33 = vld [vmem:[%s0 + $0x8] sm:$0xff]
  %v34 = vld [vmem:[%s0 + $0x10] sm:$0xff]
  %v35 = vld [vmem:[%s0 + $0x18] sm:$0xff]
  %v36 = vld [vmem:[%s1] sm:$0xff]
  %v37 = vld [vmem:[%s1 + $0x8] sm:$0xff]
  %v38 = vld [vmem:[%s1 + $0x10] sm:$0xff]
  %v39 = vld [vmem:[%s1 + $0x18] sm:$0xff]
  %v40 = vld [vmem:[%s1 + $0x20] sm:$0xff]
  %v41 = vld [vmem:[%s1 + $0x28] sm:$0xff]
  %v42 = vld [vmem:[%s1 + $0x30] sm:$0xff]
  %v43 = vld [vmem:[%s1 + $0x38] sm:$0xff]
  %v44 = vld [vmem:[%s1 + $0x40] sm:$0xff]
  %v45 = vld [vmem:[%s1 + $0x48] sm:$0xff]
  %v46 = vld [vmem:[%s1 + $0x50] sm:$0xff]
  %v47 = vld [vmem:[%s1 + $0x58] sm:$0xff]
  %v48 = vld [vmem:[%s1 + $0x60] sm:$0xff]
  %v49 = vld [vmem:[%s1 + $0x68] sm:$0xff]
  %v50 = vld [vmem:[%s1 + $0x70] sm:$0xff]
  %v51 = vld [vmem:[%s1 + $0x78] sm:$0xff]
  %v52 = vld [vmem:[%s1 + $0x80] sm:$0xff]
  %v53 = vld [vmem:[%s1 + $0x88] sm:$0xff]
  %v54 = vld [vmem:[%s1 + $0x90] sm:$0xff]
  %v55 = vld [vmem:[%s1 + $0x98] sm:$0xff]
  %v56 = vld [vmem:[%s1 + $0xa0] sm:$0xff]
  %v57 = vld [vmem:[%s1 + $0xa8] sm:$0xff]
  %v58 = vld [vmem:[%s1 + $0xb0] sm:$0xff]
  %v59 = vld [vmem:[%s1 + $0xb8] sm:$0xff]
  %v60 = vld [vmem:[%s1 + $0xc0] sm:$0xff]
  %v61 = vld [vmem:[%s1 + $0xc8] sm:$0xff]
  %v62 = vld [vmem:[%s1 + $0xd0] sm:$0xff]
  %v63 = vld [vmem:[%s1 + $0xd8] sm:$0xff]
  %v64 = vld [vmem:[%s1 + $0xe0] sm:$0xff]
  %v65 = vld [vmem:[%s1 + $0xe8] sm:$0xff]
  %v66 = vld [vmem:[%s1 + $0xf0] sm:$0xff]
  %v67 = vld [vmem:[%s1 + $0xf8] sm:$0xff]
  %v68 = vld [vmem:[%s1 + $0x100] sm:$0xff]
  %v69 = vld [vmem:[%s1 + $0x108] sm:$0xff]
  %v70 = vld [vmem:[%s1 + $0x110] sm:$0xff]
  %v71 = vld [vmem:[%s1 + $0x118] sm:$0xff]
  %v72 = vld [vmem:[%s1 + $0x120] sm:$0xff]
  %v73 = vld [vmem:[%s1 + $0x128] sm:$0xff]
  %v74 = vld [vmem:[%s1 + $0x130] sm:$0xff]
  %v75 = vld [vmem:[%s1 + $0x138] sm:$0xff]
  %v76 = vld [vmem:[%s1 + $0x140] sm:$0xff]
  %v77 = vld [vmem:[%s1 + $0x148] sm:$0xff]
  %v78 = vld [vmem:[%s1 + $0x150] sm:$0xff]
  %v79 = vld [vmem:[%s1 + $0x158] sm:$0xff]
  %v80 = vld [vmem:[%s1 + $0x160] sm:$0xff]
  %v81 = vld [vmem:[%s1 + $0x168] sm:$0xff]
  %v82 = vld [vmem:[%s1 + $0x170] sm:$0xff]
  %v83 = vld [vmem:[%s1 + $0x178] sm:$0xff]
  %v84 = vld [vmem:[%s1 + $0x180] sm:$0xff]
  %v85 = vld [vmem:[%s1 + $0x188] sm:$0xff]
  %v86 = vld [vmem:[%s1 + $0x190] sm:$0xff]
  %v87 = vld [vmem:[%s1 + $0x198] sm:$0xff]
  %v88 = vld [vmem:[%s1 + $0x1a0] sm:$0xff]
  %v89 = vld [vmem:[%s1 + $0x1a8] sm:$0xff]
  %v90 = vld [vmem:[%s1 + $0x1b0] sm:$0xff]
  %v91 = vld [vmem:[%s1 + $0x1b8] sm:$0xff]
  %v92 = vld [vmem:[%s1 + $0x1c0] sm:$0xff]
  %v93 = vld [vmem:[%s1 + $0x1c8] sm:$0xff]
  %v94 = vld [vmem:[%s1 + $0x1d0] sm:$0xff]
  %v95 = vld [vmem:[%s1 + $0x1d8] sm:$0xff]
  %v96 = vld [vmem:[%s1 + $0x1e0] sm:$0xff]
  %v97 = vld [vmem:[%s1 + $0x1e8] sm:$0xff]
  %v98 = vld [vmem:[%s1 + $0x1f0] sm:$0xff]
  %v99 = vld [vmem:[%s1 + $0x1f8] sm:$0xff]
  %v100 = vld [vmem:[%s1 + $0x200] sm:$0xff]
  %v101 = vld [vmem:[%s1 + $0x208] sm:$0xff]
  %v102 = vld [vmem:[%s1 + $0x210] sm:$0xff]
  %v103 = vld [vmem:[%s1 + $0x218] sm:$0xff]
  %v104 = vld [vmem:[%s1 + $0x220] sm:$0xff]
  %v105 = vld [vmem:[%s1 + $0x228] sm:$0xff]
  %v106 = vld [vmem:[%s1 + $0x230] sm:$0xff]
  %v107 = vld [vmem:[%s1 + $0x238] sm:$0xff]
  %v108 = vld [vmem:[%s1 + $0x240] sm:$0xff]
  %v109 = vld [vmem:[%s1 + $0x248] sm:$0xff]
  %v110 = vld [vmem:[%s1 + $0x250] sm:$0xff]
  %v111 = vld [vmem:[%s1 + $0x258] sm:$0xff]
  %v112 = vld [vmem:[%s1 + $0x260] sm:$0xff]
  %v113 = vld [vmem:[%s1 + $0x268] sm:$0xff]
  %v114 = vld [vmem:[%s1 + $0x270] sm:$0xff]
  %v115 = vld [vmem:[%s1 + $0x278] sm:$0xff]
  %v116 = vld [vmem:[%s1 + $0x280] sm:$0xff]
  %v117 = vld [vmem:[%s1 + $0x288] sm:$0xff]
  %v118 = vld [vmem:[%s1 + $0x290] sm:$0xff]
  %v119 = vld [vmem:[%s1 + $0x298] sm:$0xff]
  %v120 = vld [vmem:[%s1 + $0x2a0] sm:$0xff]
  %v121 = vld [vmem:[%s1 + $0x2a8] sm:$0xff]
  %v122 = vld [vmem:[%s1 + $0x2b0] sm:$0xff]
  %v123 = vld [vmem:[%s1 + $0x2b8] sm:$0xff]
  %v124 = vld [vmem:[%s1 + $0x2c0] sm:$0xff]
  %v125 = vld [vmem:[%s1 + $0x2c8] sm:$0xff]
  %v126 = vld [vmem:[%s1 + $0x2d0] sm:$0xff]
  %v127 = vld [vmem:[%s1 + $0x2d8] sm:$0xff]
  %v128 = vld [vmem:[%s1 + $0x2e0] sm:$0xff]
  %v129 = vld [vmem:[%s1 + $0x2e8] sm:$0xff]
  %v130 = vld [vmem:[%s1 + $0x2f0] sm:$0xff]
  %v131 = vld [vmem:[%s1 + $0x2f8] sm:$0xff]
  %v132 = vld [vmem:[%s1 + $0x300] sm:$0xff]
  %v133 = vld [vmem:[%s1 + $0x308] sm:$0xff]
  %v134 = vld [vmem:[%s1 + $0x310] sm:$0xff]
  %v135 = vld [vmem:[%s1 + $0x318] sm:$0xff]
  %v136 = vld [vmem:[%s1 + $0x320] sm:$0xff]
  %v137 = vld [vmem:[%s1 + $0x328] sm:$0xff]
  %v138 = vld [vmem:[%s1 + $0x330] sm:$0xff]
  %v139 = vld [vmem:[%s1 + $0x338] sm:$0xff]
  %v140 = vld [vmem:[%s1 + $0x340] sm:$0xff]
  %v141 = vld [vmem:[%s1 + $0x348] sm:$0xff]
  %v142 = vld [vmem:[%s1 + $0x350] sm:$0xff]
  %v143 = vld [vmem:[%s1 + $0x358] sm:$0xff]
  %v144 = vld [vmem:[%s1 + $0x360] sm:$0xff]
  %v145 = vld [vmem:[%s1 + $0x368] sm:$0xff]
  %v146 = vld [vmem:[%s1 + $0x370] sm:$0xff]
  %v147 = vld [vmem:[%s1 + $0x378] sm:$0xff]
  %v148 = vld [vmem:[%s1 + $0x380] sm:$0xff]
  %v149 = vld [vmem:[%s1 + $0x388] sm:$0xff]
  %v150 = vld [vmem:[%s1 + $0x390] sm:$0xff]
  %v151 = vld [vmem:[%s1 + $0x398] sm:$0xff]
  %v152 = vld [vmem:[%s1 + $0x3a0] sm:$0xff]
  %v153 = vld [vmem:[%s1 + $0x3a8] sm:$0xff]
  %v154 = vld [vmem:[%s1 + $0x3b0] sm:$0xff]
  %v155 = vld [vmem:[%s1 + $0x3b8] sm:$0xff]
  %v156 = vld [vmem:[%s1 + $0x3c0] sm:$0xff]
  %v157 = vld [vmem:[%s1 + $0x3c8] sm:$0xff]
  %v158 = vld [vmem:[%s1 + $0x3d0] sm:$0xff]
  %v159 = vld [vmem:[%s1 + $0x3d8] sm:$0xff]
  %v160 = vld [vmem:[%s1 + $0x3e0] sm:$0xff]
  %v161 = vld [vmem:[%s1 + $0x3e8] sm:$0xff]
  %v162 = vld [vmem:[%s1 + $0x3f0] sm:$0xff]
  %v163 = vld [vmem:[%s1 + $0x3f8] sm:$0xff]
  %v164 = vld [vmem:[%s1 + $0x400] sm:$0xff]
  %v165 = vld [vmem:[%s1 + $0x408] sm:$0xff]
  %v166 = vld [vmem:[%s1 + $0x410] sm:$0xff]
  %v167 = vld [vmem:[%s1 + $0x418] sm:$0xff]
  %v168 = vld [vmem:[%s1 + $0x420] sm:$0xff]
  %v169 = vld [vmem:[%s1 + $0x428] sm:$0xff]
  %v170 = vld [vmem:[%s1 + $0x430] sm:$0xff]
  %v171 = vld [vmem:[%s1 + $0x438] sm:$0xff]
  %v172 = vld [vmem:[%s1 + $0x440] sm:$0xff]
  %v173 = vld [vmem:[%s1 + $0x448] sm:$0xff]
  %v174 = vld [vmem:[%s1 + $0x450] sm:$0xff]
  %v175 = vld [vmem:[%s1 + $0x458] sm:$0xff]
  %v176 = vld [vmem:[%s1 + $0x460] sm:$0xff]
  %v177 = vld [vmem:[%s1 + $0x468] sm:$0xff]
  %v178 = vld [vmem:[%s1 + $0x470] sm:$0xff]
  %v179 = vld [vmem:[%s1 + $0x478] sm:$0xff]
  %v180 = vld [vmem:[%s1 + $0x480] sm:$0xff]
  %v181 = vld [vmem:[%s1 + $0x488] sm:$0xff]
  %v182 = vld [vmem:[%s1 + $0x490] sm:$0xff]
  %v183 = vld [vmem:[%s1 + $0x498] sm:$0xff]
  %v184 = vld [vmem:[%s1 + $0x4a0] sm:$0xff]
  %v185 = vld [vmem:[%s1 + $0x4a8] sm:$0xff]
  %v186 = vld [vmem:[%s1 + $0x4b0] sm:$0xff]
  %v187 = vld [vmem:[%s1 + $0x4b8] sm:$0xff]
  %v188 = vld [vmem:[%s1 + $0x4c0] sm:$0xff]
  %v189 = vld [vmem:[%s1 + $0x4c8] sm:$0xff]
  %v190 = vld [vmem:[%s1 + $0x4d0] sm:$0xff]
  %v191 = vld [vmem:[%s1 + $0x4d8] sm:$0xff]
  %v192 = vld [vmem:[%s1 + $0x4e0] sm:$0xff]
  %v193 = vld [vmem:[%s1 + $0x4e8] sm:$0xff]
  %v194 = vld [vmem:[%s1 + $0x4f0] sm:$0xff]
  %v195 = vld [vmem:[%s1 + $0x4f8] sm:$0xff]
  %v196 = vld [vmem:[%s2] sm:$0xff]
  %v197 = vld [vmem:[%s2 + $0x8] sm:$0x3]
  %v200 = vlaneseq
  %v201 = vshrl.u32 %v200, 7
  %v202 = vsub.s32 0, %v201
  %v203 = vrot.slane %v196, %v202
  %v204 = vlaneseq
  %v205 = vshrl.u32 %v204, 7
  %v206 = vsub.s32 1, %v205
  %v207 = vrot.slane %v196, %v206
  %v208 = vlaneseq
  %v209 = vshrl.u32 %v208, 7
  %v210 = vsub.s32 2, %v209
  %v211 = vrot.slane %v196, %v210
  %v212 = vlaneseq
  %v213 = vshrl.u32 %v212, 7
  %v214 = vsub.s32 3, %v213
  %v215 = vrot.slane %v196, %v214
  %v216 = vlaneseq
  %v217 = vshrl.u32 %v216, 7
  %v218 = vsub.s32 4, %v217
  %v219 = vrot.slane %v196, %v218
  %v220 = vlaneseq
  %v221 = vshrl.u32 %v220, 7
  %v222 = vsub.s32 5, %v221
  %v223 = vrot.slane %v196, %v222
  %v224 = vlaneseq
  %v225 = vshrl.u32 %v224, 7
  %v226 = vsub.s32 6, %v225
  %v227 = vrot.slane %v196, %v226
  %v228 = vlaneseq
  %v229 = vshrl.u32 %v228, 7
  %v230 = vsub.s32 7, %v229
  %v231 = vrot.slane %v196, %v230
  %v232 = vlaneseq
  %v233 = vshrl.u32 %v232, 7
  %v234 = vsub.s32 0, %v233
  %v235 = vrot.slane %v197, %v234
  %v236 = vlaneseq
  %v237 = vshrl.u32 %v236, 7
  %v238 = vsub.s32 1, %v237
  %v239 = vrot.slane %v197, %v238
  %250 = vmatprep.subr.mxu0 %v37
  %251 = vmatpush1.msra.mxu0 %v36
  %252 = vmatprep.subr.mxu0 %v47
  %253 = vmatpush1.msra.mxu0 %v46
  %254 = vmatprep.subr.mxu0 %v57
  %255 = vmatpush1.msra.mxu0 %v56
  %256 = vmatprep.subr.mxu0 %v67
  %257 = vmatpush1.msra.mxu0 %v66
  %258 = vmatprep.subr.mxu0 %v77
  %259 = vmatpush1.msra.mxu0 %v76
  %260 = vmatprep.subr.mxu0 %v87
  %261 = vmatpush1.msra.mxu0 %v86
  %262 = vmatprep.subr.mxu0 %v97
  %263 = vmatpush1.msra.mxu0 %v96
  %264 = vmatprep.subr.mxu0 %v107
  %265 = vmatpush1.msra.mxu0 %v106
  %266 = vmatprep.subr.mxu0 %v117
  %267 = vmatpush1.msra.mxu0 %v116
  %268 = vmatprep.subr.mxu0 %v127
  %269 = vmatpush1.msra.mxu0 %v126
  %270 = vmatprep.subr.mxu0 %v137
  %271 = vmatpush1.msra.mxu0 %v136
  %272 = vmatprep.subr.mxu0 %v147
  %273 = vmatpush1.msra.mxu0 %v146
  %274 = vmatprep.subr.mxu0 %v157
  %275 = vmatpush1.msra.mxu0 %v156
  %276 = vmatprep.subr.mxu0 %v167
  %277 = vmatpush1.msra.mxu0 %v166
  %278 = vmatprep.subr.mxu0 %v177
  %279 = vmatpush1.msra.mxu0 %v176
  %280 = vmatprep.subr.mxu0 %v187
  %281 = vmatpush1.msra.mxu0 %v186
  %282 = vmatprep.subr.mxu0 0.0
  %283 = vmatpush1.msra.mxu0 0.0
  %284 = vmatprep.subr.mxu0 0.0
  %285 = vmatpush1.msra.mxu0 0.0
  %286 = vmatprep.subr.mxu0 0.0
  %287 = vmatpush1.msra.mxu0 0.0
  %288 = vmatprep.subr.mxu0 0.0
  %289 = vmatpush1.msra.mxu0 0.0
  %290 = vmatprep.subr.mxu0 0.0
  %291 = vmatpush1.msra.mxu0 0.0
  %292 = vmatprep.subr.mxu0 0.0
  %293 = vmatpush1.msra.mxu0 0.0
  %294 = vmatprep.subr.mxu0 0.0
  %295 = vmatpush1.msra.mxu0 0.0
  %296 = vmatprep.subr.mxu0 0.0
  %297 = vmatpush1.msra.mxu0 0.0
  %298 = vmatprep.subr.mxu0 0.0
  %299 = vmatpush1.msra.mxu0 0.0
  %300 = vmatprep.subr.mxu0 0.0
  %301 = vmatpush1.msra.mxu0 0.0
  %302 = vmatprep.subr.mxu0 0.0
  %303 = vmatpush1.msra.mxu0 0.0
  %304 = vmatprep.subr.mxu0 0.0
  %305 = vmatpush1.msra.mxu0 0.0
  %306 = vmatprep.subr.mxu0 0.0
  %307 = vmatpush1.msra.mxu0 0.0
  %308 = vmatprep.subr.mxu0 0.0
  %309 = vmatpush1.msra.mxu0 0.0
  %310 = vmatprep.subr.mxu0 0.0
  %311 = vmatpush1.msra.mxu0 0.0
  %312 = vmatprep.subr.mxu0 0.0
  %313 = vmatpush1.msra.mxu0 0.0
  %314 = vmatprep.mubr.f32.mxu0 0.0
  %315 = vmatmul.mubr.f32.gmra.mrb[0].mxu0 %v32
  %v316 = vpop.f32.mrb[0].mxu0
  %v317 = vadd.f32 %v203, %v316
  %v318 = vpop.f32.mrb[0].mxu0
  %v319 = vadd.f32 %v207, %v318
  %320 = vmatprep.mubr.f32.mxu0 0.0
  %321 = vmatmul.mubr.f32.gmra.mrb[0].mxu0 %v33
  %v322 = vpop.f32.mrb[0].mxu0
  %v323 = vadd.f32 %v203, %v322
  %v324 = vpop.f32.mrb[0].mxu0
  %v325 = vadd.f32 %v207, %v324
  %326 = vmatprep.mubr.f32.mxu0 0.0
  %327 = vmatmul.mubr.f32.gmra.mrb[0].mxu0 %v34
  %v328 = vpop.f32.mrb[0].mxu0
  %v329 = vadd.f32 %v203, %v328
  %v330 = vpop.f32.mrb[0].mxu0
  %v331 = vadd.f32 %v207, %v330
  %332 = vmatprep.mubr.f32.mxu0 0.0
  %333 = vmatmul.mubr.f32.gmra.mrb[0].mxu0 %v35
  %v334 = vpop.f32.mrb[0].mxu0
  %v335 = vadd.f32 %v203, %v334
  %v336 = vpop.f32.mrb[0].mxu0
  %v337 = vadd.f32 %v207, %v336
  %338 = vdwg.mxu0
  %339 = vmatprep.subr.mxu0 %v39
  %340 = vmatpush1.msra.mxu0 %v38
  %341 = vmatprep.subr.mxu0 %v49
  %342 = vmatpush1.msra.mxu0 %v48
  %343 = vmatprep.subr.mxu0 %v59
  %344 = vmatpush1.msra.mxu0 %v58
  %345 = vmatprep.subr.mxu0 %v69
  %346 = vmatpush1.msra.mxu0 %v68
  %347 = vmatprep.subr.mxu0 %v79
  %348 = vmatpush1.msra.mxu0 %v78
  %349 = vmatprep.subr.mxu0 %v89
  %350 = vmatpush1.msra.mxu0 %v88
  %351 = vmatprep.subr.mxu0 %v99
  %352 = vmatpush1.msra.mxu0 %v98
  %353 = vmatprep.subr.mxu0 %v109
  %354 = vmatpush1.msra.mxu0 %v108
  %355 = vmatprep.subr.mxu0 %v119
  %356 = vmatpush1.msra.mxu0 %v118
  %357 = vmatprep.subr.mxu0 %v129
  %358 = vmatpush1.msra.mxu0 %v128
  %359 = vmatprep.subr.mxu0 %v139
  %360 = vmatpush1.msra.mxu0 %v138
  %361 = vmatprep.subr.mxu0 %v149
  %362 = vmatpush1.msra.mxu0 %v148
  %363 = vmatprep.subr.mxu0 %v159
  %364 = vmatpush1.msra.mxu0 %v158
  %365 = vmatprep.subr.mxu0 %v169
  %366 = vmatpush1.msra.mxu0 %v168
  %367 = vmatprep.subr.mxu0 %v179
  %368 = vmatpush1.msra.mxu0 %v178
  %369 = vmatprep.subr.mxu0 %v189
  %370 = vmatpush1.msra.mxu0 %v188
  %371 = vmatprep.subr.mxu0 0.0
  %372 = vmatpush1.msra.mxu0 0.0
  %373 = vmatprep.subr.mxu0 0.0
  %374 = vmatpush1.msra.mxu0 0.0
  %375 = vmatprep.subr.mxu0 0.0
  %376 = vmatpush1.msra.mxu0 0.0
  %377 = vmatprep.subr.mxu0 0.0
  %378 = vmatpush1.msra.mxu0 0.0
  %379 = vmatprep.subr.mxu0 0.0
  %380 = vmatpush1.msra.mxu0 0.0
  %381 = vmatprep.subr.mxu0 0.0
  %382 = vmatpush1.msra.mxu0 0.0
  %383 = vmatprep.subr.mxu0 0.0
  %384 = vmatpush1.msra.mxu0 0.0
  %385 = vmatprep.subr.mxu0 0.0
  %386 = vmatpush1.msra.mxu0 0.0
  %387 = vmatprep.subr.mxu0 0.0
  %388 = vmatpush1.msra.mxu0 0.0
  %389 = vmatprep.subr.mxu0 0.0
  %390 = vmatpush1.msra.mxu0 0.0
  %391 = vmatprep.subr.mxu0 0.0
  %392 = vmatpush1.msra.mxu0 0.0
  %393 = vmatprep.subr.mxu0 0.0
  %394 = vmatpush1.msra.mxu0 0.0
  %395 = vmatprep.subr.mxu0 0.0
  %396 = vmatpush1.msra.mxu0 0.0
  %397 = vmatprep.subr.mxu0 0.0
  %398 = vmatpush1.msra.mxu0 0.0
  %399 = vmatprep.subr.mxu0 0.0
  %400 = vmatpush1.msra.mxu0 0.0
  %401 = vmatprep.subr.mxu0 0.0
  %402 = vmatpush1.msra.mxu0 0.0
  %403 = vmatprep.mubr.f32.mxu0 0.0
  %404 = vmatmul.mubr.f32.gmra.mrb[0].mxu0 %v32
  %v405 = vpop.f32.mrb[0].mxu0
  %v406 = vadd.f32 %v211, %v405
  %v407 = vpop.f32.mrb[0].mxu0
  %v408 = vadd.f32 %v215, %v407
  %409 = vmatprep.mubr.f32.mxu0 0.0
  %410 = vmatmul.mubr.f32.gmra.mrb[0].mxu0 %v33
  %v411 = vpop.f32.mrb[0].mxu0
  %v412 = vadd.f32 %v211, %v411
  %v413 = vpop.f32.mrb[0].mxu0
  %v414 = vadd.f32 %v215, %v413
  %415 = vmatprep.mubr.f32.mxu0 0.0
  %416 = vmatmul.mubr.f32.gmra.mrb[0].mxu0 %v34
  %v417 = vpop.f32.mrb[0].mxu0
  %v418 = vadd.f32 %v211, %v417
  %v419 = vpop.f32.mrb[0].mxu0
  %v420 = vadd.f32 %v215, %v419
  %421 = vmatprep.mubr.f32.mxu0 0.0
  %422 = vmatmul.mubr.f32.gmra.mrb[0].mxu0 %v35
  %v423 = vpop.f32.mrb[0].mxu0
  %v424 = vadd.f32 %v211, %v423
  %v425 = vpop.f32.mrb[0].mxu0
  %v426 = vadd.f32 %v215, %v425
  %427 = vdwg.mxu0
  %428 = vmatprep.subr.mxu0 %v41
  %429 = vmatpush1.msra.mxu0 %v40
  %430 = vmatprep.subr.mxu0 %v51
  %431 = vmatpush1.msra.mxu0 %v50
  %432 = vmatprep.subr.mxu0 %v61
  %433 = vmatpush1.msra.mxu0 %v60
  %434 = vmatprep.subr.mxu0 %v71
  %435 = vmatpush1.msra.mxu0 %v70
  %436 = vmatprep.subr.mxu0 %v81
  %437 = vmatpush1.msra.mxu0 %v80
  %438 = vmatprep.subr.mxu0 %v91
  %439 = vmatpush1.msra.mxu0 %v90
  %440 = vmatprep.subr.mxu0 %v101
  %441 = vmatpush1.msra.mxu0 %v100
  %442 = vmatprep.subr.mxu0 %v111
  %443 = vmatpush1.msra.mxu0 %v110
  %444 = vmatprep.subr.mxu0 %v121
  %445 = vmatpush1.msra.mxu0 %v120
  %446 = vmatprep.subr.mxu0 %v131
  %447 = vmatpush1.msra.mxu0 %v130
  %448 = vmatprep.subr.mxu0 %v141
  %449 = vmatpush1.msra.mxu0 %v140
  %450 = vmatprep.subr.mxu0 %v151
  %451 = vmatpush1.msra.mxu0 %v150
  %452 = vmatprep.subr.mxu0 %v161
  %453 = vmatpush1.msra.mxu0 %v160
  %454 = vmatprep.subr.mxu0 %v171
  %455 = vmatpush1.msra.mxu0 %v170
  %456 = vmatprep.subr.mxu0 %v181
  %457 = vmatpush1.msra.mxu0 %v180
  %458 = vmatprep.subr.mxu0 %v191
  %459 = vmatpush1.msra.mxu0 %v190
  %460 = vmatprep.subr.mxu0 0.0
  %461 = vmatpush1.msra.mxu0 0.0
  %462 = vmatprep.subr.mxu0 0.0
  %463 = vmatpush1.msra.mxu0 0.0
  %464 = vmatprep.subr.mxu0 0.0
  %465 = vmatpush1.msra.mxu0 0.0
  %466 = vmatprep.subr.mxu0 0.0
  %467 = vmatpush1.msra.mxu0 0.0
  %468 = vmatprep.subr.mxu0 0.0
  %469 = vmatpush1.msra.mxu0 0.0
  %470 = vmatprep.subr.mxu0 0.0
  %471 = vmatpush1.msra.mxu0 0.0
  %472 = vmatprep.subr.mxu0 0.0
  %473 = vmatpush1.msra.mxu0 0.0
  %474 = vmatprep.subr.mxu0 0.0
  %475 = vmatpush1.msra.mxu0 0.0
  %476 = vmatprep.subr.mxu0 0.0
  %477 = vmatpush1.msra.mxu0 0.0
  %478 = vmatprep.subr.mxu0 0.0
  %479 = vmatpush1.msra.mxu0 0.0
  %480 = vmatprep.subr.mxu0 0.0
  %481 = vmatpush1.msra.mxu0 0.0
  %482 = vmatprep.subr.mxu0 0.0
  %483 = vmatpush1.msra.mxu0 0.0
  %484 = vmatprep.subr.mxu0 0.0
  %485 = vmatpush1.msra.mxu0 0.0
  %486 = vmatprep.subr.mxu0 0.0
  %487 = vmatpush1.msra.mxu0 0.0
  %488 = vmatprep.subr.mxu0 0.0
  %489 = vmatpush1.msra.mxu0 0.0
  %490 = vmatprep.subr.mxu0 0.0
  %491 = vmatpush1.msra.mxu0 0.0
  %492 = vmatprep.mubr.f32.mxu0 0.0
  %493 = vmatmul.mubr.f32.gmra.mrb[0].mxu0 %v32
  %v494 = vpop.f32.mrb[0].mxu0
  %v495 = vadd.f32 %v219, %v494
  %v496 = vpop.f32.mrb[0].mxu0
  %v497 = vadd.f32 %v223, %v496
  %498 = vmatprep.mubr.f32.mxu0 0.0
  %499 = vmatmul.mubr.f32.gmra.mrb[0].mxu0 %v33
  %v500 = vpop.f32.mrb[0].mxu0
  %v501 = vadd.f32 %v219, %v500
  %v502 = vpop.f32.mrb[0].mxu0
  %v503 = vadd.f32 %v223, %v502
  %504 = vmatprep.mubr.f32.mxu0 0.0
  %505 = vmatmul.mubr.f32.gmra.mrb[0].mxu0 %v34
  %v506 = vpop.f32.mrb[0].mxu0
  %v507 = vadd.f32 %v219, %v506
  %v508 = vpop.f32.mrb[0].mxu0
  %v509 = vadd.f32 %v223, %v508
  %510 = vmatprep.mubr.f32.mxu0 0.0
  %511 = vmatmul.mubr.f32.gmra.mrb[0].mxu0 %v35
  %v512 = vpop.f32.mrb[0].mxu0
  %v513 = vadd.f32 %v219, %v512
  %v514 = vpop.f32.mrb[0].mxu0
  %v515 = vadd.f32 %v223, %v514
  %516 = vdwg.mxu0
  %517 = vmatprep.subr.mxu0 %v43
  %518 = vmatpush1.msra.mxu0 %v42
  %519 = vmatprep.subr.mxu0 %v53
  %520 = vmatpush1.msra.mxu0 %v52
  %521 = vmatprep.subr.mxu0 %v63
  %522 = vmatpush1.msra.mxu0 %v62
  %523 = vmatprep.subr.mxu0 %v73
  %524 = vmatpush1.msra.mxu0 %v72
  %525 = vmatprep.subr.mxu0 %v83
  %526 = vmatpush1.msra.mxu0 %v82
  %527 = vmatprep.subr.mxu0 %v93
  %528 = vmatpush1.msra.mxu0 %v92
  %529 = vmatprep.subr.mxu0 %v103
  %530 = vmatpush1.msra.mxu0 %v102
  %531 = vmatprep.subr.mxu0 %v113
  %532 = vmatpush1.msra.mxu0 %v112
  %533 = vmatprep.subr.mxu0 %v123
  %534 = vmatpush1.msra.mxu0 %v122
  %535 = vmatprep.subr.mxu0 %v133
  %536 = vmatpush1.msra.mxu0 %v132
  %537 = vmatprep.subr.mxu0 %v143
  %538 = vmatpush1.msra.mxu0 %v142
  %539 = vmatprep.subr.mxu0 %v153
  %540 = vmatpush1.msra.mxu0 %v152
  %541 = vmatprep.subr.mxu0 %v163
  %542 = vmatpush1.msra.mxu0 %v162
  %543 = vmatprep.subr.mxu0 %v173
  %544 = vmatpush1.msra.mxu0 %v172
  %545 = vmatprep.subr.mxu0 %v183
  %546 = vmatpush1.msra.mxu0 %v182
  %547 = vmatprep.subr.mxu0 %v193
  %548 = vmatpush1.msra.mxu0 %v192
  %549 = vmatprep.subr.mxu0 0.0
  %550 = vmatpush1.msra.mxu0 0.0
  %551 = vmatprep.subr.mxu0 0.0
  %552 = vmatpush1.msra.mxu0 0.0
  %553 = vmatprep.subr.mxu0 0.0
  %554 = vmatpush1.msra.mxu0 0.0
  %555 = vmatprep.subr.mxu0 0.0
  %556 = vmatpush1.msra.mxu0 0.0
  %557 = vmatprep.subr.mxu0 0.0
  %558 = vmatpush1.msra.mxu0 0.0
  %559 = vmatprep.subr.mxu0 0.0
  %560 = vmatpush1.msra.mxu0 0.0
  %561 = vmatprep.subr.mxu0 0.0
  %562 = vmatpush1.msra.mxu0 0.0
  %563 = vmatprep.subr.mxu0 0.0
  %564 = vmatpush1.msra.mxu0 0.0
  %565 = vmatprep.subr.mxu0 0.0
  %566 = vmatpush1.msra.mxu0 0.0
  %567 = vmatprep.subr.mxu0 0.0
  %568 = vmatpush1.msra.mxu0 0.0
  %569 = vmatprep.subr.mxu0 0.0
  %570 = vmatpush1.msra.mxu0 0.0
  %571 = vmatprep.subr.mxu0 0.0
  %572 = vmatpush1.msra.mxu0 0.0
  %573 = vmatprep.subr.mxu0 0.0
  %574 = vmatpush1.msra.mxu0 0.0
  %575 = vmatprep.subr.mxu0 0.0
  %576 = vmatpush1.msra.mxu0 0.0
  %577 = vmatprep.subr.mxu0 0.0
  %578 = vmatpush1.msra.mxu0 0.0
  %579 = vmatprep.subr.mxu0 0.0
  %580 = vmatpush1.msra.mxu0 0.0
  %581 = vmatprep.mubr.f32.mxu0 0.0
  %582 = vmatmul.mubr.f32.gmra.mrb[0].mxu0 %v32
  %v583 = vpop.f32.mrb[0].mxu0
  %v584 = vadd.f32 %v227, %v583
  %v585 = vpop.f32.mrb[0].mxu0
  %v586 = vadd.f32 %v231, %v585
  %587 = vmatprep.mubr.f32.mxu0 0.0
  %588 = vmatmul.mubr.f32.gmra.mrb[0].mxu0 %v33
  %v589 = vpop.f32.mrb[0].mxu0
  %v590 = vadd.f32 %v227, %v589
  %v591 = vpop.f32.mrb[0].mxu0
  %v592 = vadd.f32 %v231, %v591
  %593 = vmatprep.mubr.f32.mxu0 0.0
  %594 = vmatmul.mubr.f32.gmra.mrb[0].mxu0 %v34
  %v595 = vpop.f32.mrb[0].mxu0
  %v596 = vadd.f32 %v227, %v595
  %v597 = vpop.f32.mrb[0].mxu0
  %v598 = vadd.f32 %v231, %v597
  %599 = vmatprep.mubr.f32.mxu0 0.0
  %600 = vmatmul.mubr.f32.gmra.mrb[0].mxu0 %v35
  %v601 = vpop.f32.mrb[0].mxu0
  %v602 = vadd.f32 %v227, %v601
  %v603 = vpop.f32.mrb[0].mxu0
  %v604 = vadd.f32 %v231, %v603
  %605 = vdwg.mxu0
  %606 = vmatprep.subr.mxu0 %v45
  %607 = vmatpush1.msra.mxu0 %v44
  %608 = vmatprep.subr.mxu0 %v55
  %609 = vmatpush1.msra.mxu0 %v54
  %610 = vmatprep.subr.mxu0 %v65
  %611 = vmatpush1.msra.mxu0 %v64
  %612 = vmatprep.subr.mxu0 %v75
  %613 = vmatpush1.msra.mxu0 %v74
  %614 = vmatprep.subr.mxu0 %v85
  %615 = vmatpush1.msra.mxu0 %v84
  %616 = vmatprep.subr.mxu0 %v95
  %617 = vmatpush1.msra.mxu0 %v94
  %618 = vmatprep.subr.mxu0 %v105
  %619 = vmatpush1.msra.mxu0 %v104
  %620 = vmatprep.subr.mxu0 %v115
  %621 = vmatpush1.msra.mxu0 %v114
  %622 = vmatprep.subr.mxu0 %v125
  %623 = vmatpush1.msra.mxu0 %v124
  %624 = vmatprep.subr.mxu0 %v135
  %625 = vmatpush1.msra.mxu0 %v134
  %626 = vmatprep.subr.mxu0 %v145
  %627 = vmatpush1.msra.mxu0 %v144
  %628 = vmatprep.subr.mxu0 %v155
  %629 = vmatpush1.msra.mxu0 %v154
  %630 = vmatprep.subr.mxu0 %v165
  %631 = vmatpush1.msra.mxu0 %v164
  %632 = vmatprep.subr.mxu0 %v175
  %633 = vmatpush1.msra.mxu0 %v174
  %634 = vmatprep.subr.mxu0 %v185
  %635 = vmatpush1.msra.mxu0 %v184
  %636 = vmatprep.subr.mxu0 %v195
  %637 = vmatpush1.msra.mxu0 %v194
  %638 = vmatprep.subr.mxu0 0.0
  %639 = vmatpush1.msra.mxu0 0.0
  %640 = vmatprep.subr.mxu0 0.0
  %641 = vmatpush1.msra.mxu0 0.0
  %642 = vmatprep.subr.mxu0 0.0
  %643 = vmatpush1.msra.mxu0 0.0
  %644 = vmatprep.subr.mxu0 0.0
  %645 = vmatpush1.msra.mxu0 0.0
  %646 = vmatprep.subr.mxu0 0.0
  %647 = vmatpush1.msra.mxu0 0.0
  %648 = vmatprep.subr.mxu0 0.0
  %649 = vmatpush1.msra.mxu0 0.0
  %650 = vmatprep.subr.mxu0 0.0
  %651 = vmatpush1.msra.mxu0 0.0
  %652 = vmatprep.subr.mxu0 0.0
  %653 = vmatpush1.msra.mxu0 0.0
  %654 = vmatprep.subr.mxu0 0.0
  %655 = vmatpush1.msra.mxu0 0.0
  %656 = vmatprep.subr.mxu0 0.0
  %657 = vmatpush1.msra.mxu0 0.0
  %658 = vmatprep.subr.mxu0 0.0
  %659 = vmatpush1.msra.mxu0 0.0
  %660 = vmatprep.subr.mxu0 0.0
  %661 = vmatpush1.msra.mxu0 0.0
  %662 = vmatprep.subr.mxu0 0.0
  %663 = vmatpush1.msra.mxu0 0.0
  %664 = vmatprep.subr.mxu0 0.0
  %665 = vmatpush1.msra.mxu0 0.0
  %666 = vmatprep.subr.mxu0 0.0
  %667 = vmatpush1.msra.mxu0 0.0
  %668 = vmatprep.subr.mxu0 0.0
  %669 = vmatpush1.msra.mxu0 0.0
  %670 = vmatprep.mubr.f32.mxu0 0.0
  %671 = vmatmul.mubr.f32.gmra.mrb[0].mxu0 %v32
  %v672 = vpop.f32.mrb[0].mxu0
  %v673 = vadd.f32 %v235, %v672
  %v674 = vpop.f32.mrb[0].mxu0
  %v675 = vadd.f32 %v239, %v674
  %676 = vmatprep.mubr.f32.mxu0 0.0
  %677 = vmatmul.mubr.f32.gmra.mrb[0].mxu0 %v33
  %v678 = vpop.f32.mrb[0].mxu0
  %v679 = vadd.f32 %v235, %v678
  %v680 = vpop.f32.mrb[0].mxu0
  %v681 = vadd.f32 %v239, %v680
  %682 = vmatprep.mubr.f32.mxu0 0.0
  %683 = vmatmul.mubr.f32.gmra.mrb[0].mxu0 %v34
  %v684 = vpop.f32.mrb[0].mxu0
  %v685 = vadd.f32 %v235, %v684
  %v686 = vpop.f32.mrb[0].mxu0
  %v687 = vadd.f32 %v239, %v686
  %688 = vmatprep.mubr.f32.mxu0 0.0
  %689 = vmatmul.mubr.f32.gmra.mrb[0].mxu0 %v35
  %v690 = vpop.f32.mrb[0].mxu0
  %v691 = vadd.f32 %v235, %v690
  %v692 = vpop.f32.mrb[0].mxu0
  %v693 = vadd.f32 %v239, %v692
  %694 = vdwg.mxu0
  %v695 = vmax.f32 %v317, 0.0
  %v696 = vmax.f32 %v319, 0.0
  %v697 = vmax.f32 %v406, 0.0
  %v698 = vmax.f32 %v408, 0.0
  %v699 = vmax.f32 %v495, 0.0
  %v700 = vmax.f32 %v497, 0.0
  %v701 = vmax.f32 %v584, 0.0
  %v702 = vmax.f32 %v586, 0.0
  %v703 = vmax.f32 %v673, 0.0
  %v704 = vmax.f32 %v675, 0.0
  %v705 = vmax.f32 %v323, 0.0
  %v706 = vmax.f32 %v325, 0.0
  %v707 = vmax.f32 %v412, 0.0
  %v708 = vmax.f32 %v414, 0.0
  %v709 = vmax.f32 %v501, 0.0
  %v710 = vmax.f32 %v503, 0.0
  %v711 = vmax.f32 %v590, 0.0
  %v712 = vmax.f32 %v592, 0.0
  %v713 = vmax.f32 %v679, 0.0
  %v714 = vmax.f32 %v681, 0.0
  %v715 = vmax.f32 %v329, 0.0
  %v716 = vmax.f32 %v331, 0.0
  %v717 = vmax.f32 %v418, 0.0
  %v718 = vmax.f32 %v420, 0.0
  %v719 = vmax.f32 %v507, 0.0
  %v720 = vmax.f32 %v509, 0.0
  %v721 = vmax.f32 %v596, 0.0
  %v722 = vmax.f32 %v598, 0.0
  %v723 = vmax.f32 %v685, 0.0
  %v724 = vmax.f32 %v687, 0.0
  %v725 = vmax.f32 %v335, 0.0
  %v726 = vmax.f32 %v337, 0.0
  %v727 = vmax.f32 %v424, 0.0
  %v728 = vmax.f32 %v426, 0.0
  %v729 = vmax.f32 %v513, 0.0
  %v730 = vmax.f32 %v515, 0.0
  %v731 = vmax.f32 %v602, 0.0
  %v732 = vmax.f32 %v604, 0.0
  %v733 = vmax.f32 %v691, 0.0
  %v734 = vmax.f32 %v693, 0.0
  %v735 = vld [vmem:[%s3] sm:$0xff]
  %v736 = vld [vmem:[%s3 + $0x8] sm:$0xff]
  %v737 = vld [vmem:[%s3 + $0x10] sm:$0xff]
  %v738 = vld [vmem:[%s3 + $0x18] sm:$0xff]
  %v739 = vld [vmem:[%s3 + $0x20] sm:$0xff]
  %v740 = vld [vmem:[%s3 + $0x28] sm:$0xff]
  %v741 = vld [vmem:[%s3 + $0x30] sm:$0xff]
  %v742 = vld [vmem:[%s3 + $0x38] sm:$0xff]
  %v743 = vld [vmem:[%s3 + $0x40] sm:$0xff]
  %v744 = vld [vmem:[%s3 + $0x48] sm:$0xff]
  %v745 = vld [vmem:[%s3 + $0x50] sm:$0xff]
  %v746 = vld [vmem:[%s3 + $0x58] sm:$0xff]
  %v747 = vld [vmem:[%s3 + $0x60] sm:$0xff]
  %v748 = vld [vmem:[%s3 + $0x68] sm:$0xff]
  %v749 = vld [vmem:[%s3 + $0x70] sm:$0xff]
  %v750 = vld [vmem:[%s3 + $0x78] sm:$0xff]
  %v751 = vld [vmem:[%s3 + $0x80] sm:$0xff]
  %v752 = vld [vmem:[%s3 + $0x88] sm:$0xff]
  %v753 = vld [vmem:[%s3 + $0x90] sm:$0xff]
  %v754 = vld [vmem:[%s3 + $0x98] sm:$0xff]
  %v755 = vld [vmem:[%s3 + $0xa0] sm:$0xff]
  %v756 = vld [vmem:[%s3 + $0xa8] sm:$0xff]
  %v757 = vld [vmem:[%s3 + $0xb0] sm:$0xff]
  %v758 = vld [vmem:[%s3 + $0xb8] sm:$0xff]
  %v759 = vld [vmem:[%s3 + $0xc0] sm:$0xff]
  %v760 = vld [vmem:[%s3 + $0xc8] sm:$0xff]
  %v761 = vld [vmem:[%s3 + $0xd0] sm:$0xff]
  %v762 = vld [vmem:[%s3 + $0xd8] sm:$0xff]
  %v763 = vld [vmem:[%s3 + $0xe0] sm:$0xff]
  %v764 = vld [vmem:[%s3 + $0xe8] sm:$0xff]
  %v765 = vld [vmem:[%s3 + $0xf0] sm:$0xff]
  %v766 = vld [vmem:[%s3 + $0xf8] sm:$0xff]
  %v767 = vld [vmem:[%s3 + $0x100] sm:$0xff]
  %v768 = vld [vmem:[%s3 + $0x108] sm:$0xff]
  %v769 = vld [vmem:[%s3 + $0x110] sm:$0xff]
  %v770 = vld [vmem:[%s3 + $0x118] sm:$0xff]
  %v771 = vld [vmem:[%s3 + $0x120] sm:$0xff]
  %v772 = vld [vmem:[%s3 + $0x128] sm:$0xff]
  %v773 = vld [vmem:[%s3 + $0x130] sm:$0xff]
  %v774 = vld [vmem:[%s3 + $0x138] sm:$0xff]
  %v775 = vld [vmem:[%s3 + $0x140] sm:$0xff]
  %v776 = vld [vmem:[%s3 + $0x148] sm:$0xff]
  %v777 = vld [vmem:[%s3 + $0x150] sm:$0xff]
  %v778 = vld [vmem:[%s3 + $0x158] sm:$0xff]
  %v779 = vld [vmem:[%s3 + $0x160] sm:$0xff]
  %v780 = vld [vmem:[%s3 + $0x168] sm:$0xff]
  %v781 = vld [vmem:[%s3 + $0x170] sm:$0xff]
  %v782 = vld [vmem:[%s3 + $0x178] sm:$0xff]
  %v783 = vld [vmem:[%s3 + $0x180] sm:$0xff]
  %v784 = vld [vmem:[%s3 + $0x188] sm:$0xff]
  %v785 = vld [vmem:[%s3 + $0x190] sm:$0xff]
  %v786 = vld [vmem:[%s3 + $0x198] sm:$0xff]
  %v787 = vld [vmem:[%s3 + $0x1a0] sm:$0xff]
  %v788 = vld [vmem:[%s3 + $0x1a8] sm:$0xff]
  %v789 = vld [vmem:[%s3 + $0x1b0] sm:$0xff]
  %v790 = vld [vmem:[%s3 + $0x1b8] sm:$0xff]
  %v791 = vld [vmem:[%s3 + $0x1c0] sm:$0xff]
  %v792 = vld [vmem:[%s3 + $0x1c8] sm:$0xff]
  %v793 = vld [vmem:[%s3 + $0x1d0] sm:$0xff]
  %v794 = vld [vmem:[%s3 + $0x1d8] sm:$0xff]
  %v795 = vld [vmem:[%s3 + $0x1e0] sm:$0xff]
  %v796 = vld [vmem:[%s3 + $0x1e8] sm:$0xff]
  %v797 = vld [vmem:[%s3 + $0x1f0] sm:$0xff]
  %v798 = vld [vmem:[%s3 + $0x1f8] sm:$0xff]
  %v799 = vld [vmem:[%s3 + $0x200] sm:$0xff]
  %v800 = vld [vmem:[%s3 + $0x208] sm:$0xff]
  %v801 = vld [vmem:[%s3 + $0x210] sm:$0xff]
  %v802 = vld [vmem:[%s3 + $0x218] sm:$0xff]
  %v803 = vld [vmem:[%s3 + $0x220] sm:$0xff]
  %v804 = vld [vmem:[%s3 + $0x228] sm:$0xff]
  %v805 = vld [vmem:[%s3 + $0x230] sm:$0xff]
  %v806 = vld [vmem:[%s3 + $0x238] sm:$0xff]
  %v807 = vld [vmem:[%s3 + $0x240] sm:$0xff]
  %v808 = vld [vmem:[%s3 + $0x248] sm:$0xff]
  %v809 = vld [vmem:[%s3 + $0x250] sm:$0xff]
  %v810 = vld [vmem:[%s3 + $0x258] sm:$0xff]
  %v811 = vld [vmem:[%s3 + $0x260] sm:$0xff]
  %v812 = vld [vmem:[%s3 + $0x268] sm:$0xff]
  %v813 = vld [vmem:[%s3 + $0x270] sm:$0xff]
  %v814 = vld [vmem:[%s3 + $0x278] sm:$0xff]
  %v815 = vld [vmem:[%s3 + $0x280] sm:$0xff]
  %v816 = vld [vmem:[%s3 + $0x288] sm:$0xff]
  %v817 = vld [vmem:[%s3 + $0x290] sm:$0xff]
  %v818 = vld [vmem:[%s3 + $0x298] sm:$0xff]
  %v819 = vld [vmem:[%s3 + $0x2a0] sm:$0xff]
  %v820 = vld [vmem:[%s3 + $0x2a8] sm:$0xff]
  %v821 = vld [vmem:[%s3 + $0x2b0] sm:$0xff]
  %v822 = vld [vmem:[%s3 + $0x2b8] sm:$0xff]
  %v823 = vld [vmem:[%s3 + $0x2c0] sm:$0xff]
  %v824 = vld [vmem:[%s3 + $0x2c8] sm:$0xff]
  %v825 = vld [vmem:[%s3 + $0x2d0] sm:$0xff]
  %v826 = vld [vmem:[%s3 + $0x2d8] sm:$0xff]
  %v827 = vld [vmem:[%s3 + $0x2e0] sm:$0xff]
  %v828 = vld [vmem:[%s3 + $0x2e8] sm:$0xff]
  %v829 = vld [vmem:[%s3 + $0x2f0] sm:$0xff]
  %v830 = vld [vmem:[%s3 + $0x2f8] sm:$0xff]
  %v831 = vld [vmem:[%s3 + $0x300] sm:$0xff]
  %v832 = vld [vmem:[%s3 + $0x308] sm:$0xff]
  %v833 = vld [vmem:[%s3 + $0x310] sm:$0xff]
  %v834 = vld [vmem:[%s3 + $0x318] sm:$0xff]
  %v835 = vld [vmem:[%s3 + $0x320] sm:$0xff]
  %v836 = vld [vmem:[%s3 + $0x328] sm:$0xff]
  %v837 = vld [vmem:[%s3 + $0x330] sm:$0xff]
  %v838 = vld [vmem:[%s3 + $0x338] sm:$0xff]
  %v839 = vld [vmem:[%s3 + $0x340] sm:$0xff]
  %v840 = vld [vmem:[%s3 + $0x348] sm:$0xff]
  %v841 = vld [vmem:[%s3 + $0x350] sm:$0xff]
  %v842 = vld [vmem:[%s3 + $0x358] sm:$0xff]
  %v843 = vld [vmem:[%s3 + $0x360] sm:$0xff]
  %v844 = vld [vmem:[%s3 + $0x368] sm:$0xff]
  %v845 = vld [vmem:[%s3 + $0x370] sm:$0xff]
  %v846 = vld [vmem:[%s3 + $0x378] sm:$0xff]
  %v847 = vld [vmem:[%s3 + $0x380] sm:$0xff]
  %v848 = vld [vmem:[%s3 + $0x388] sm:$0xff]
  %v849 = vld [vmem:[%s3 + $0x390] sm:$0xff]
  %v850 = vld [vmem:[%s3 + $0x398] sm:$0xff]
  %v851 = vld [vmem:[%s3 + $0x3a0] sm:$0xff]
  %v852 = vld [vmem:[%s3 + $0x3a8] sm:$0xff]
  %v853 = vld [vmem:[%s3 + $0x3b0] sm:$0xff]
  %v854 = vld [vmem:[%s3 + $0x3b8] sm:$0xff]
  %v855 = vld [vmem:[%s3 + $0x3c0] sm:$0xff]
  %v856 = vld [vmem:[%s3 + $0x3c8] sm:$0xff]
  %v857 = vld [vmem:[%s3 + $0x3d0] sm:$0xff]
  %v858 = vld [vmem:[%s3 + $0x3d8] sm:$0xff]
  %v859 = vld [vmem:[%s3 + $0x3e0] sm:$0xff]
  %v860 = vld [vmem:[%s3 + $0x3e8] sm:$0xff]
  %v861 = vld [vmem:[%s3 + $0x3f0] sm:$0xff]
  %v862 = vld [vmem:[%s3 + $0x3f8] sm:$0xff]
  %v863 = vld [vmem:[%s3 + $0x400] sm:$0xff]
  %v864 = vld [vmem:[%s3 + $0x408] sm:$0xff]
  %v865 = vld [vmem:[%s3 + $0x410] sm:$0xff]
  %v866 = vld [vmem:[%s3 + $0x418] sm:$0xff]
  %v867 = vld [vmem:[%s3 + $0x420] sm:$0xff]
  %v868 = vld [vmem:[%s3 + $0x428] sm:$0xff]
  %v869 = vld [vmem:[%s3 + $0x430] sm:$0xff]
  %v870 = vld [vmem:[%s3 + $0x438] sm:$0xff]
  %v871 = vld [vmem:[%s3 + $0x440] sm:$0xff]
  %v872 = vld [vmem:[%s3 + $0x448] sm:$0xff]
  %v873 = vld [vmem:[%s3 + $0x450] sm:$0xff]
  %v874 = vld [vmem:[%s3 + $0x458] sm:$0xff]
  %v875 = vld [vmem:[%s3 + $0x460] sm:$0xff]
  %v876 = vld [vmem:[%s3 + $0x468] sm:$0xff]
  %v877 = vld [vmem:[%s3 + $0x470] sm:$0xff]
  %v878 = vld [vmem:[%s3 + $0x478] sm:$0xff]
  %v879 = vld [vmem:[%s3 + $0x480] sm:$0xff]
  %v880 = vld [vmem:[%s3 + $0x488] sm:$0xff]
  %v881 = vld [vmem:[%s3 + $0x490] sm:$0xff]
  %v882 = vld [vmem:[%s3 + $0x498] sm:$0xff]
  %v883 = vld [vmem:[%s3 + $0x4a0] sm:$0xff]
  %v884 = vld [vmem:[%s3 + $0x4a8] sm:$0xff]
  %v885 = vld [vmem:[%s3 + $0x4b0] sm:$0xff]
  %v886 = vld [vmem:[%s3 + $0x4b8] sm:$0xff]
  %v887 = vld [vmem:[%s3 + $0x4c0] sm:$0xff]
  %v888 = vld [vmem:[%s3 + $0x4c8] sm:$0xff]
  %v889 = vld [vmem:[%s3 + $0x4d0] sm:$0xff]
  %v890 = vld [vmem:[%s3 + $0x4d8] sm:$0xff]
  %v891 = vld [vmem:[%s3 + $0x4e0] sm:$0xff]
  %v892 = vld [vmem:[%s3 + $0x4e8] sm:$0xff]
  %v893 = vld [vmem:[%s3 + $0x4f0] sm:$0xff]
  %v894 = vld [vmem:[%s3 + $0x4f8] sm:$0xff]
  %v895 = vld [vmem:[%s4] sm:$0x1]
  %v897 = vlaneseq
  %v898 = vshrl.u32 %v897, 7
  %v899 = vsub.s32 0, %v898
  %v900 = vrot.slane %v895, %v899
  %902 = vmatprep.subr.mxu0 0.0
  %903 = vmatpush1.msra.mxu0 %v735
  %904 = vmatprep.subr.mxu0 0.0
  %905 = vmatpush1.msra.mxu0 %v736
  %906 = vmatprep.subr.mxu0 0.0
  %907 = vmatpush1.msra.mxu0 %v737
  %908 = vmatprep.subr.mxu0 0.0
  %909 = vmatpush1.msra.mxu0 %v738
  %910 = vmatprep.subr.mxu0 0.0
  %911 = vmatpush1.msra.mxu0 %v739
  %912 = vmatprep.subr.mxu0 0.0
  %913 = vmatpush1.msra.mxu0 %v740
  %914 = vmatprep.subr.mxu0 0.0
  %915 = vmatpush1.msra.mxu0 %v741
  %916 = vmatprep.subr.mxu0 0.0
  %917 = vmatpush1.msra.mxu0 %v742
  %918 = vmatprep.subr.mxu0 0.0
  %919 = vmatpush1.msra.mxu0 %v743
  %920 = vmatprep.subr.mxu0 0.0
  %921 = vmatpush1.msra.mxu0 %v744
  %922 = vmatprep.subr.mxu0 0.0
  %923 = vmatpush1.msra.mxu0 %v745
  %924 = vmatprep.subr.mxu0 0.0
  %925 = vmatpush1.msra.mxu0 %v746
  %926 = vmatprep.subr.mxu0 0.0
  %927 = vmatpush1.msra.mxu0 %v747
  %928 = vmatprep.subr.mxu0 0.0
  %929 = vmatpush1.msra.mxu0 %v748
  %930 = vmatprep.subr.mxu0 0.0
  %931 = vmatpush1.msra.mxu0 %v749
  %932 = vmatprep.subr.mxu0 0.0
  %933 = vmatpush1.msra.mxu0 %v750
  %934 = vmatprep.subr.mxu0 0.0
  %935 = vmatpush1.msra.mxu0 %v751
  %936 = vmatprep.subr.mxu0 0.0
  %937 = vmatpush1.msra.mxu0 %v752
  %938 = vmatprep.subr.mxu0 0.0
  %939 = vmatpush1.msra.mxu0 %v753
  %940 = vmatprep.subr.mxu0 0.0
  %941 = vmatpush1.msra.mxu0 %v754
  %942 = vmatprep.subr.mxu0 0.0
  %943 = vmatpush1.msra.mxu0 %v755
  %944 = vmatprep.subr.mxu0 0.0
  %945 = vmatpush1.msra.mxu0 %v756
  %946 = vmatprep.subr.mxu0 0.0
  %947 = vmatpush1.msra.mxu0 %v757
  %948 = vmatprep.subr.mxu0 0.0
  %949 = vmatpush1.msra.mxu0 %v758
  %950 = vmatprep.subr.mxu0 0.0
  %951 = vmatpush1.msra.mxu0 %v759
  %952 = vmatprep.subr.mxu0 0.0
  %953 = vmatpush1.msra.mxu0 %v760
  %954 = vmatprep.subr.mxu0 0.0
  %955 = vmatpush1.msra.mxu0 %v761
  %956 = vmatprep.subr.mxu0 0.0
  %957 = vmatpush1.msra.mxu0 %v762
  %958 = vmatprep.subr.mxu0 0.0
  %959 = vmatpush1.msra.mxu0 %v763
  %960 = vmatprep.subr.mxu0 0.0
  %961 = vmatpush1.msra.mxu0 %v764
  %962 = vmatprep.subr.mxu0 0.0
  %963 = vmatpush1.msra.mxu0 %v765
  %964 = vmatprep.subr.mxu0 0.0
  %965 = vmatpush1.msra.mxu0 %v766
  %966 = vmatprep.mubr.f32.mxu0 %v696
  %967 = vmatmul.mubr.f32.gmra.mrb[0].mxu0 %v695
  %v968 = vpop.f32.mrb[0].mxu0
  %v969 = vadd.f32 %v900, %v968
  %v970 = vpop.f32.mrb[0].mxu0
  %971 = vmatprep.mubr.f32.mxu0 %v706
  %972 = vmatmul.mubr.f32.gmra.mrb[0].mxu0 %v705
  %v973 = vpop.f32.mrb[0].mxu0
  %v974 = vadd.f32 %v900, %v973
  %v975 = vpop.f32.mrb[0].mxu0
  %976 = vmatprep.mubr.f32.mxu0 %v716
  %977 = vmatmul.mubr.f32.gmra.mrb[0].mxu0 %v715
  %v978 = vpop.f32.mrb[0].mxu0
  %v979 = vadd.f32 %v900, %v978
  %v980 = vpop.f32.mrb[0].mxu0
  %981 = vmatprep.mubr.f32.mxu0 %v726
  %982 = vmatmul.mubr.f32.gmra.mrb[0].mxu0 %v725
  %v983 = vpop.f32.mrb[0].mxu0
  %v984 = vadd.f32 %v900, %v983
  %v985 = vpop.f32.mrb[0].mxu0
  %986 = vdwg.mxu0
  %987 = vmatprep.subr.mxu0 0.0
  %988 = vmatpush1.msra.mxu0 %v767
  %989 = vmatprep.subr.mxu0 0.0
  %990 = vmatpush1.msra.mxu0 %v768
  %991 = vmatprep.subr.mxu0 0.0
  %992 = vmatpush1.msra.mxu0 %v769
  %993 = vmatprep.subr.mxu0 0.0
  %994 = vmatpush1.msra.mxu0 %v770
  %995 = vmatprep.subr.mxu0 0.0
  %996 = vmatpush1.msra.mxu0 %v771
  %997 = vmatprep.subr.mxu0 0.0
  %998 = vmatpush1.msra.mxu0 %v772
  %999 = vmatprep.subr.mxu0 0.0
  %1000 = vmatpush1.msra.mxu0 %v773
  %1001 = vmatprep.subr.mxu0 0.0
  %1002 = vmatpush1.msra.mxu0 %v774
  %1003 = vmatprep.subr.mxu0 0.0
  %1004 = vmatpush1.msra.mxu0 %v775
  %1005 = vmatprep.subr.mxu0 0.0
  %1006 = vmatpush1.msra.mxu0 %v776
  %1007 = vmatprep.subr.mxu0 0.0
  %1008 = vmatpush1.msra.mxu0 %v777
  %1009 = vmatprep.subr.mxu0 0.0
  %1010 = vmatpush1.msra.mxu0 %v778
  %1011 = vmatprep.subr.mxu0 0.0
  %1012 = vmatpush1.msra.mxu0 %v779
  %1013 = vmatprep.subr.mxu0 0.0
  %1014 = vmatpush1.msra.mxu0 %v780
  %1015 = vmatprep.subr.mxu0 0.0
  %1016 = vmatpush1.msra.mxu0 %v781
  %1017 = vmatprep.subr.mxu0 0.0
  %1018 = vmatpush1.msra.mxu0 %v782
  %1019 = vmatprep.subr.mxu0 0.0
  %1020 = vmatpush1.msra.mxu0 %v783
  %1021 = vmatprep.subr.mxu0 0.0
  %1022 = vmatpush1.msra.mxu0 %v784
  %1023 = vmatprep.subr.mxu0 0.0
  %1024 = vmatpush1.msra.mxu0 %v785
  %1025 = vmatprep.subr.mxu0 0.0
  %1026 = vmatpush1.msra.mxu0 %v786
  %1027 = vmatprep.subr.mxu0 0.0
  %1028 = vmatpush1.msra.mxu0 %v787
  %1029 = vmatprep.subr.mxu0 0.0
  %1030 = vmatpush1.msra.mxu0 %v788
  %1031 = vmatprep.subr.mxu0 0.0
  %1032 = vmatpush1.msra.mxu0 %v789
  %1033 = vmatprep.subr.mxu0 0.0
  %1034 = vmatpush1.msra.mxu0 %v790
  %1035 = vmatprep.subr.mxu0 0.0
  %1036 = vmatpush1.msra.mxu0 %v791
  %1037 = vmatprep.subr.mxu0 0.0
  %1038 = vmatpush1.msra.mxu0 %v792
  %1039 = vmatprep.subr.mxu0 0.0
  %1040 = vmatpush1.msra.mxu0 %v793
  %1041 = vmatprep.subr.mxu0 0.0
  %1042 = vmatpush1.msra.mxu0 %v794
  %1043 = vmatprep.subr.mxu0 0.0
  %1044 = vmatpush1.msra.mxu0 %v795
  %1045 = vmatprep.subr.mxu0 0.0
  %1046 = vmatpush1.msra.mxu0 %v796
  %1047 = vmatprep.subr.mxu0 0.0
  %1048 = vmatpush1.msra.mxu0 %v797
  %1049 = vmatprep.subr.mxu0 0.0
  %1050 = vmatpush1.msra.mxu0 %v798
  %1051 = vmatprep.mubr.f32.mxu0 %v698
  %1052 = vmatmul.mubr.f32.gmra.mrb[0].mxu0 %v697
  %v1053 = vpop.f32.mrb[0].mxu0
  %v1054 = vadd.f32 %v969, %v1053
  %v1055 = vpop.f32.mrb[0].mxu0
  %1056 = vmatprep.mubr.f32.mxu0 %v708
  %1057 = vmatmul.mubr.f32.gmra.mrb[0].mxu0 %v707
  %v1058 = vpop.f32.mrb[0].mxu0
  %v1059 = vadd.f32 %v974, %v1058
  %v1060 = vpop.f32.mrb[0].mxu0
  %1061 = vmatprep.mubr.f32.mxu0 %v718
  %1062 = vmatmul.mubr.f32.gmra.mrb[0].mxu0 %v717
  %v1063 = vpop.f32.mrb[0].mxu0
  %v1064 = vadd.f32 %v979, %v1063
  %v1065 = vpop.f32.mrb[0].mxu0
  %1066 = vmatprep.mubr.f32.mxu0 %v728
  %1067 = vmatmul.mubr.f32.gmra.mrb[0].mxu0 %v727
  %v1068 = vpop.f32.mrb[0].mxu0
  %v1069 = vadd.f32 %v984, %v1068
  %v1070 = vpop.f32.mrb[0].mxu0
  %1071 = vdwg.mxu0
  %1072 = vmatprep.subr.mxu0 0.0
  %1073 = vmatpush1.msra.mxu0 %v799
  %1074 = vmatprep.subr.mxu0 0.0
  %1075 = vmatpush1.msra.mxu0 %v800
  %1076 = vmatprep.subr.mxu0 0.0
  %1077 = vmatpush1.msra.mxu0 %v801
  %1078 = vmatprep.subr.mxu0 0.0
  %1079 = vmatpush1.msra.mxu0 %v802
  %1080 = vmatprep.subr.mxu0 0.0
  %1081 = vmatpush1.msra.mxu0 %v803
  %1082 = vmatprep.subr.mxu0 0.0
  %1083 = vmatpush1.msra.mxu0 %v804
  %1084 = vmatprep.subr.mxu0 0.0
  %1085 = vmatpush1.msra.mxu0 %v805
  %1086 = vmatprep.subr.mxu0 0.0
  %1087 = vmatpush1.msra.mxu0 %v806
  %1088 = vmatprep.subr.mxu0 0.0
  %1089 = vmatpush1.msra.mxu0 %v807
  %1090 = vmatprep.subr.mxu0 0.0
  %1091 = vmatpush1.msra.mxu0 %v808
  %1092 = vmatprep.subr.mxu0 0.0
  %1093 = vmatpush1.msra.mxu0 %v809
  %1094 = vmatprep.subr.mxu0 0.0
  %1095 = vmatpush1.msra.mxu0 %v810
  %1096 = vmatprep.subr.mxu0 0.0
  %1097 = vmatpush1.msra.mxu0 %v811
  %1098 = vmatprep.subr.mxu0 0.0
  %1099 = vmatpush1.msra.mxu0 %v812
  %1100 = vmatprep.subr.mxu0 0.0
  %1101 = vmatpush1.msra.mxu0 %v813
  %1102 = vmatprep.subr.mxu0 0.0
  %1103 = vmatpush1.msra.mxu0 %v814
  %1104 = vmatprep.subr.mxu0 0.0
  %1105 = vmatpush1.msra.mxu0 %v815
  %1106 = vmatprep.subr.mxu0 0.0
  %1107 = vmatpush1.msra.mxu0 %v816
  %1108 = vmatprep.subr.mxu0 0.0
  %1109 = vmatpush1.msra.mxu0 %v817
  %1110 = vmatprep.subr.mxu0 0.0
  %1111 = vmatpush1.msra.mxu0 %v818
  %1112 = vmatprep.subr.mxu0 0.0
  %1113 = vmatpush1.msra.mxu0 %v819
  %1114 = vmatprep.subr.mxu0 0.0
  %1115 = vmatpush1.msra.mxu0 %v820
  %1116 = vmatprep.subr.mxu0 0.0
  %1117 = vmatpush1.msra.mxu0 %v821
  %1118 = vmatprep.subr.mxu0 0.0
  %1119 = vmatpush1.msra.mxu0 %v822
  %1120 = vmatprep.subr.mxu0 0.0
  %1121 = vmatpush1.msra.mxu0 %v823
  %1122 = vmatprep.subr.mxu0 0.0
  %1123 = vmatpush1.msra.mxu0 %v824
  %1124 = vmatprep.subr.mxu0 0.0
  %1125 = vmatpush1.msra.mxu0 %v825
  %1126 = vmatprep.subr.mxu0 0.0
  %1127 = vmatpush1.msra.mxu0 %v826
  %1128 = vmatprep.subr.mxu0 0.0
  %1129 = vmatpush1.msra.mxu0 %v827
  %1130 = vmatprep.subr.mxu0 0.0
  %1131 = vmatpush1.msra.mxu0 %v828
  %1132 = vmatprep.subr.mxu0 0.0
  %1133 = vmatpush1.msra.mxu0 %v829
  %1134 = vmatprep.subr.mxu0 0.0
  %1135 = vmatpush1.msra.mxu0 %v830
  %1136 = vmatprep.mubr.f32.mxu0 %v700
  %1137 = vmatmul.mubr.f32.gmra.mrb[0].mxu0 %v699
  %v1138 = vpop.f32.mrb[0].mxu0
  %v1139 = vadd.f32 %v1054, %v1138
  %v1140 = vpop.f32.mrb[0].mxu0
  %1141 = vmatprep.mubr.f32.mxu0 %v710
  %1142 = vmatmul.mubr.f32.gmra.mrb[0].mxu0 %v709
  %v1143 = vpop.f32.mrb[0].mxu0
  %v1144 = vadd.f32 %v1059, %v1143
  %v1145 = vpop.f32.mrb[0].mxu0
  %1146 = vmatprep.mubr.f32.mxu0 %v720
  %1147 = vmatmul.mubr.f32.gmra.mrb[0].mxu0 %v719
  %v1148 = vpop.f32.mrb[0].mxu0
  %v1149 = vadd.f32 %v1064, %v1148
  %v1150 = vpop.f32.mrb[0].mxu0
  %1151 = vmatprep.mubr.f32.mxu0 %v730
  %1152 = vmatmul.mubr.f32.gmra.mrb[0].mxu0 %v729
  %v1153 = vpop.f32.mrb[0].mxu0
  %v1154 = vadd.f32 %v1069, %v1153
  %v1155 = vpop.f32.mrb[0].mxu0
  %1156 = vdwg.mxu0
  %1157 = vmatprep.subr.mxu0 0.0
  %1158 = vmatpush1.msra.mxu0 %v831
  %1159 = vmatprep.subr.mxu0 0.0
  %1160 = vmatpush1.msra.mxu0 %v832
  %1161 = vmatprep.subr.mxu0 0.0
  %1162 = vmatpush1.msra.mxu0 %v833
  %1163 = vmatprep.subr.mxu0 0.0
  %1164 = vmatpush1.msra.mxu0 %v834
  %1165 = vmatprep.subr.mxu0 0.0
  %1166 = vmatpush1.msra.mxu0 %v835
  %1167 = vmatprep.subr.mxu0 0.0
  %1168 = vmatpush1.msra.mxu0 %v836
  %1169 = vmatprep.subr.mxu0 0.0
  %1170 = vmatpush1.msra.mxu0 %v837
  %1171 = vmatprep.subr.mxu0 0.0
  %1172 = vmatpush1.msra.mxu0 %v838
  %1173 = vmatprep.subr.mxu0 0.0
  %1174 = vmatpush1.msra.mxu0 %v839
  %1175 = vmatprep.subr.mxu0 0.0
  %1176 = vmatpush1.msra.mxu0 %v840
  %1177 = vmatprep.subr.mxu0 0.0
  %1178 = vmatpush1.msra.mxu0 %v841
  %1179 = vmatprep.subr.mxu0 0.0
  %1180 = vmatpush1.msra.mxu0 %v842
  %1181 = vmatprep.subr.mxu0 0.0
  %1182 = vmatpush1.msra.mxu0 %v843
  %1183 = vmatprep.subr.mxu0 0.0
  %1184 = vmatpush1.msra.mxu0 %v844
  %1185 = vmatprep.subr.mxu0 0.0
  %1186 = vmatpush1.msra.mxu0 %v845
  %1187 = vmatprep.subr.mxu0 0.0
  %1188 = vmatpush1.msra.mxu0 %v846
  %1189 = vmatprep.subr.mxu0 0.0
  %1190 = vmatpush1.msra.mxu0 %v847
  %1191 = vmatprep.subr.mxu0 0.0
  %1192 = vmatpush1.msra.mxu0 %v848
  %1193 = vmatprep.subr.mxu0 0.0
  %1194 = vmatpush1.msra.mxu0 %v849
  %1195 = vmatprep.subr.mxu0 0.0
  %1196 = vmatpush1.msra.mxu0 %v850
  %1197 = vmatprep.subr.mxu0 0.0
  %1198 = vmatpush1.msra.mxu0 %v851
  %1199 = vmatprep.subr.mxu0 0.0
  %1200 = vmatpush1.msra.mxu0 %v852
  %1201 = vmatprep.subr.mxu0 0.0
  %1202 = vmatpush1.msra.mxu0 %v853
  %1203 = vmatprep.subr.mxu0 0.0
  %1204 = vmatpush1.msra.mxu0 %v854
  %1205 = vmatprep.subr.mxu0 0.0
  %1206 = vmatpush1.msra.mxu0 %v855
  %1207 = vmatprep.subr.mxu0 0.0
  %1208 = vmatpush1.msra.mxu0 %v856
  %1209 = vmatprep.subr.mxu0 0.0
  %1210 = vmatpush1.msra.mxu0 %v857
  %1211 = vmatprep.subr.mxu0 0.0
  %1212 = vmatpush1.msra.mxu0 %v858
  %1213 = vmatprep.subr.mxu0 0.0
  %1214 = vmatpush1.msra.mxu0 %v859
  %1215 = vmatprep.subr.mxu0 0.0
  %1216 = vmatpush1.msra.mxu0 %v860
  %1217 = vmatprep.subr.mxu0 0.0
  %1218 = vmatpush1.msra.mxu0 %v861
  %1219 = vmatprep.subr.mxu0 0.0
  %1220 = vmatpush1.msra.mxu0 %v862
  %1221 = vmatprep.mubr.f32.mxu0 %v702
  %1222 = vmatmul.mubr.f32.gmra.mrb[0].mxu0 %v701
  %v1223 = vpop.f32.mrb[0].mxu0
  %v1224 = vadd.f32 %v1139, %v1223
  %v1225 = vpop.f32.mrb[0].mxu0
  %1226 = vmatprep.mubr.f32.mxu0 %v712
  %1227 = vmatmul.mubr.f32.gmra.mrb[0].mxu0 %v711
  %v1228 = vpop.f32.mrb[0].mxu0
  %v1229 = vadd.f32 %v1144, %v1228
  %v1230 = vpop.f32.mrb[0].mxu0
  %1231 = vmatprep.mubr.f32.mxu0 %v722
  %1232 = vmatmul.mubr.f32.gmra.mrb[0].mxu0 %v721
  %v1233 = vpop.f32.mrb[0].mxu0
  %v1234 = vadd.f32 %v1149, %v1233
  %v1235 = vpop.f32.mrb[0].mxu0
  %1236 = vmatprep.mubr.f32.mxu0 %v732
  %1237 = vmatmul.mubr.f32.gmra.mrb[0].mxu0 %v731
  %v1238 = vpop.f32.mrb[0].mxu0
  %v1239 = vadd.f32 %v1154, %v1238
  %v1240 = vpop.f32.mrb[0].mxu0
  %1241 = vdwg.mxu0
  %1242 = vmatprep.subr.mxu0 0.0
  %1243 = vmatpush1.msra.mxu0 %v863
  %1244 = vmatprep.subr.mxu0 0.0
  %1245 = vmatpush1.msra.mxu0 %v864
  %1246 = vmatprep.subr.mxu0 0.0
  %1247 = vmatpush1.msra.mxu0 %v865
  %1248 = vmatprep.subr.mxu0 0.0
  %1249 = vmatpush1.msra.mxu0 %v866
  %1250 = vmatprep.subr.mxu0 0.0
  %1251 = vmatpush1.msra.mxu0 %v867
  %1252 = vmatprep.subr.mxu0 0.0
  %1253 = vmatpush1.msra.mxu0 %v868
  %1254 = vmatprep.subr.mxu0 0.0
  %1255 = vmatpush1.msra.mxu0 %v869
  %1256 = vmatprep.subr.mxu0 0.0
  %1257 = vmatpush1.msra.mxu0 %v870
  %1258 = vmatprep.subr.mxu0 0.0
  %1259 = vmatpush1.msra.mxu0 %v871
  %1260 = vmatprep.subr.mxu0 0.0
  %1261 = vmatpush1.msra.mxu0 %v872
  %1262 = vmatprep.subr.mxu0 0.0
  %1263 = vmatpush1.msra.mxu0 %v873
  %1264 = vmatprep.subr.mxu0 0.0
  %1265 = vmatpush1.msra.mxu0 %v874
  %1266 = vmatprep.subr.mxu0 0.0
  %1267 = vmatpush1.msra.mxu0 %v875
  %1268 = vmatprep.subr.mxu0 0.0
  %1269 = vmatpush1.msra.mxu0 %v876
  %1270 = vmatprep.subr.mxu0 0.0
  %1271 = vmatpush1.msra.mxu0 %v877
  %1272 = vmatprep.subr.mxu0 0.0
  %1273 = vmatpush1.msra.mxu0 %v878
  %1274 = vmatprep.subr.mxu0 0.0
  %1275 = vmatpush1.msra.mxu0 %v879
  %1276 = vmatprep.subr.mxu0 0.0
  %1277 = vmatpush1.msra.mxu0 %v880
  %1278 = vmatprep.subr.mxu0 0.0
  %1279 = vmatpush1.msra.mxu0 %v881
  %1280 = vmatprep.subr.mxu0 0.0
  %1281 = vmatpush1.msra.mxu0 %v882
  %1282 = vmatprep.subr.mxu0 0.0
  %1283 = vmatpush1.msra.mxu0 %v883
  %1284 = vmatprep.subr.mxu0 0.0
  %1285 = vmatpush1.msra.mxu0 %v884
  %1286 = vmatprep.subr.mxu0 0.0
  %1287 = vmatpush1.msra.mxu0 %v885
  %1288 = vmatprep.subr.mxu0 0.0
  %1289 = vmatpush1.msra.mxu0 %v886
  %1290 = vmatprep.subr.mxu0 0.0
  %1291 = vmatpush1.msra.mxu0 %v887
  %1292 = vmatprep.subr.mxu0 0.0
  %1293 = vmatpush1.msra.mxu0 %v888
  %1294 = vmatprep.subr.mxu0 0.0
  %1295 = vmatpush1.msra.mxu0 %v889
  %1296 = vmatprep.subr.mxu0 0.0
  %1297 = vmatpush1.msra.mxu0 %v890
  %1298 = vmatprep.subr.mxu0 0.0
  %1299 = vmatpush1.msra.mxu0 %v891
  %1300 = vmatprep.subr.mxu0 0.0
  %1301 = vmatpush1.msra.mxu0 %v892
  %1302 = vmatprep.subr.mxu0 0.0
  %1303 = vmatpush1.msra.mxu0 %v893
  %1304 = vmatprep.subr.mxu0 0.0
  %1305 = vmatpush1.msra.mxu0 %v894
  %1306 = vmatprep.mubr.f32.mxu0 %v704
  %1307 = vmatmul.mubr.f32.gmra.mrb[0].mxu0 %v703
  %v1308 = vpop.f32.mrb[0].mxu0
  %v1309 = vadd.f32 %v1224, %v1308
  %v1310 = vpop.f32.mrb[0].mxu0
  %1311 = vmatprep.mubr.f32.mxu0 %v714
  %1312 = vmatmul.mubr.f32.gmra.mrb[0].mxu0 %v713
  %v1313 = vpop.f32.mrb[0].mxu0
  %v1314 = vadd.f32 %v1229, %v1313
  %v1315 = vpop.f32.mrb[0].mxu0
  %1316 = vmatprep.mubr.f32.mxu0 %v724
  %1317 = vmatmul.mubr.f32.gmra.mrb[0].mxu0 %v723
  %v1318 = vpop.f32.mrb[0].mxu0
  %v1319 = vadd.f32 %v1234, %v1318
  %v1320 = vpop.f32.mrb[0].mxu0
  %1321 = vmatprep.mubr.f32.mxu0 %v734
  %1322 = vmatmul.mubr.f32.gmra.mrb[0].mxu0 %v733
  %v1323 = vpop.f32.mrb[0].mxu0
  %v1324 = vadd.f32 %v1239, %v1323
  %v1325 = vpop.f32.mrb[0].mxu0
  %1326 = vdwg.mxu0
  %v1327 = vld [vmem:[%s5] sm:$0xff]
  %v1328 = vld [vmem:[%s5 + $0x8] sm:$0xff]
  %v1329 = vld [vmem:[%s5 + $0x10] sm:$0xff]
  %v1330 = vld [vmem:[%s5 + $0x18] sm:$0xff]
  %v1331 = vld [vmem:[%s5 + $0x20] sm:$0xff]
  %v1332 = vld [vmem:[%s5 + $0x28] sm:$0xff]
  %v1333 = vld [vmem:[%s5 + $0x30] sm:$0xff]
  %v1334 = vld [vmem:[%s5 + $0x38] sm:$0xff]
  %v1335 = vld [vmem:[%s5 + $0x40] sm:$0xff]
  %v1336 = vld [vmem:[%s5 + $0x48] sm:$0xff]
  %v1337 = vld [vmem:[%s5 + $0x50] sm:$0xff]
  %v1338 = vld [vmem:[%s5 + $0x58] sm:$0xff]
  %v1339 = vld [vmem:[%s5 + $0x60] sm:$0xff]
  %v1340 = vld [vmem:[%s5 + $0x68] sm:$0xff]
  %v1341 = vld [vmem:[%s5 + $0x70] sm:$0xff]
  %v1342 = vld [vmem:[%s5 + $0x78] sm:$0xff]
  %v1343 = vld [vmem:[%s5 + $0x80] sm:$0xff]
  %v1344 = vld [vmem:[%s5 + $0x88] sm:$0xff]
  %v1345 = vld [vmem:[%s5 + $0x90] sm:$0xff]
  %v1346 = vld [vmem:[%s5 + $0x98] sm:$0xff]
  %vm1347 = vcmask 654336
  %v1349 = vsel %vm1347, %v1314, 0
  %1351 = vmatprep.subr.mxu0 0.0
  %1352 = vmatpush1.msra.mxu0 %v1337
  %1353 = vmatprep.subr.mxu0 0.0
  %1354 = vmatpush1.msra.mxu0 %v1338
  %1355 = vmatprep.subr.mxu0 0.0
  %1356 = vmatpush1.msra.mxu0 %v1339
  %1357 = vmatprep.subr.mxu0 0.0
  %1358 = vmatpush1.msra.mxu0 %v1340
  %1359 = vmatprep.subr.mxu0 0.0
  %1360 = vmatpush1.msra.mxu0 %v1341
  %1361 = vmatprep.subr.mxu0 0.0
  %1362 = vmatpush1.msra.mxu0 %v1342
  %1363 = vmatprep.subr.mxu0 0.0
  %1364 = vmatpush1.msra.mxu0 %v1343
  %1365 = vmatprep.subr.mxu0 0.0
  %1366 = vmatpush1.msra.mxu0 %v1344
  %1367 = vmatprep.subr.mxu0 0.0
  %1368 = vmatpush1.msra.mxu0 %v1345
  %1369 = vmatprep.subr.mxu0 0.0
  %1370 = vmatpush1.msra.mxu0 %v1346
  %1371 = vmatprep.subr.mxu0 0.0
  %1372 = vmatpush1.msra.mxu0 0.0
  %1373 = vmatprep.subr.mxu0 0.0
  %1374 = vmatpush1.msra.mxu0 0.0
  %1375 = vmatprep.subr.mxu0 0.0
  %1376 = vmatpush1.msra.mxu0 0.0
  %1377 = vmatprep.subr.mxu0 0.0
  %1378 = vmatpush1.msra.mxu0 0.0
  %1379 = vmatprep.subr.mxu0 0.0
  %1380 = vmatpush1.msra.mxu0 0.0
  %1381 = vmatprep.subr.mxu0 0.0
  %1382 = vmatpush1.msra.mxu0 0.0
  %1383 = vmatprep.subr.mxu0 0.0
  %1384 = vmatpush1.msra.mxu0 0.0
  %1385 = vmatprep.subr.mxu0 0.0
  %1386 = vmatpush1.msra.mxu0 0.0
  %1387 = vmatprep.subr.mxu0 0.0
  %1388 = vmatpush1.msra.mxu0 0.0
  %1389 = vmatprep.subr.mxu0 0.0
  %1390 = vmatpush1.msra.mxu0 0.0
  %1391 = vmatprep.subr.mxu0 0.0
  %1392 = vmatpush1.msra.mxu0 0.0
  %1393 = vmatprep.subr.mxu0 0.0
  %1394 = vmatpush1.msra.mxu0 0.0
  %1395 = vmatprep.subr.mxu0 0.0
  %1396 = vmatpush1.msra.mxu0 0.0
  %1397 = vmatprep.subr.mxu0 0.0
  %1398 = vmatpush1.msra.mxu0 0.0
  %1399 = vmatprep.subr.mxu0 0.0
  %1400 = vmatpush1.msra.mxu0 0.0
  %1401 = vmatprep.subr.mxu0 0.0
  %1402 = vmatpush1.msra.mxu0 0.0
  %1403 = vmatprep.subr.mxu0 0.0
  %1404 = vmatpush1.msra.mxu0 0.0
  %1405 = vmatprep.subr.mxu0 0.0
  %1406 = vmatpush1.msra.mxu0 0.0
  %1407 = vmatprep.subr.mxu0 0.0
  %1408 = vmatpush1.msra.mxu0 0.0
  %1409 = vmatprep.subr.mxu0 0.0
  %1410 = vmatpush1.msra.mxu0 0.0
  %1411 = vmatprep.subr.mxu0 0.0
  %1412 = vmatpush1.msra.mxu0 0.0
  %1413 = vmatprep.subr.mxu0 0.0
  %1414 = vmatpush1.msra.mxu0 0.0
  %1415 = vmatprep.mubr.f32.mxu0 0.0
  %1416 = vmatmul.mubr.f32.gmra.mrb[0].mxu0 %v1349
  %v1417 = vpop.f32.mrb[0].mxu0
  %v1418 = vadd.f32 0.0, %v1417
  %v1419 = vpop.f32.mrb[0].mxu0
  %1420 = vdwg.mxu0
  %v1422 = vsel %vm1347, %v1309, 0
  %1424 = vmatprep.subr.mxu0 0.0
  %1425 = vmatpush1.msra.mxu0 %v1327
  %1426 = vmatprep.subr.mxu0 0.0
  %1427 = vmatpush1.msra.mxu0 %v1328
  %1428 = vmatprep.subr.mxu0 0.0
  %1429 = vmatpush1.msra.mxu0 %v1329
  %1430 = vmatprep.subr.mxu0 0.0
  %1431 = vmatpush1.msra.mxu0 %v1330
  %1432 = vmatprep.subr.mxu0 0.0
  %1433 = vmatpush1.msra.mxu0 %v1331
  %1434 = vmatprep.subr.mxu0 0.0
  %1435 = vmatpush1.msra.mxu0 %v1332
  %1436 = vmatprep.subr.mxu0 0.0
  %1437 = vmatpush1.msra.mxu0 %v1333
  %1438 = vmatprep.subr.mxu0 0.0
  %1439 = vmatpush1.msra.mxu0 %v1334
  %1440 = vmatprep.subr.mxu0 0.0
  %1441 = vmatpush1.msra.mxu0 %v1335
  %1442 = vmatprep.subr.mxu0 0.0
  %1443 = vmatpush1.msra.mxu0 %v1336
  %1444 = vmatprep.subr.mxu0 0.0
  %1445 = vmatpush1.msra.mxu0 0.0
  %1446 = vmatprep.subr.mxu0 0.0
  %1447 = vmatpush1.msra.mxu0 0.0
  %1448 = vmatprep.subr.mxu0 0.0
  %1449 = vmatpush1.msra.mxu0 0.0
  %1450 = vmatprep.subr.mxu0 0.0
  %1451 = vmatpush1.msra.mxu0 0.0
  %1452 = vmatprep.subr.mxu0 0.0
  %1453 = vmatpush1.msra.mxu0 0.0
  %1454 = vmatprep.subr.mxu0 0.0
  %1455 = vmatpush1.msra.mxu0 0.0
  %1456 = vmatprep.subr.mxu0 0.0
  %1457 = vmatpush1.msra.mxu0 0.0
  %1458 = vmatprep.subr.mxu0 0.0
  %1459 = vmatpush1.msra.mxu0 0.0
  %1460 = vmatprep.subr.mxu0 0.0
  %1461 = vmatpush1.msra.mxu0 0.0
  %1462 = vmatprep.subr.mxu0 0.0
  %1463 = vmatpush1.msra.mxu0 0.0
  %1464 = vmatprep.subr.mxu0 0.0
  %1465 = vmatpush1.msra.mxu0 0.0
  %1466 = vmatprep.subr.mxu0 0.0
  %1467 = vmatpush1.msra.mxu0 0.0
  %1468 = vmatprep.subr.mxu0 0.0
  %1469 = vmatpush1.msra.mxu0 0.0
  %1470 = vmatprep.subr.mxu0 0.0
  %1471 = vmatpush1.msra.mxu0 0.0
  %1472 = vmatprep.subr.mxu0 0.0
  %1473 = vmatpush1.msra.mxu0 0.0
  %1474 = vmatprep.subr.mxu0 0.0
  %1475 = vmatpush1.msra.mxu0 0.0
  %1476 = vmatprep.subr.mxu0 0.0
  %1477 = vmatpush1.msra.mxu0 0.0
  %1478 = vmatprep.subr.mxu0 0.0
  %1479 = vmatpush1.msra.mxu0 0.0
  %1480 = vmatprep.subr.mxu0 0.0
  %1481 = vmatpush1.msra.mxu0 0.0
  %1482 = vmatprep.subr.mxu0 0.0
  %1483 = vmatpush1.msra.mxu0 0.0
  %1484 = vmatprep.subr.mxu0 0.0
  %1485 = vmatpush1.msra.mxu0 0.0
  %1486 = vmatprep.subr.mxu0 0.0
  %1487 = vmatpush1.msra.mxu0 0.0
  %1488 = vmatprep.mubr.f32.mxu0 0.0
  %1489 = vmatmul.mubr.f32.gmra.mrb[0].mxu0 %v1422
  %v1490 = vpop.f32.mrb[0].mxu0
  %v1491 = vadd.f32 %v1418, %v1490
  %v1492 = vpop.f32.mrb[0].mxu0
  %1493 = vdwg.mxu0
  %v1494 = vld [vmem:[%s5 + $0xa0] sm:$0xff]
  %v1495 = vld [vmem:[%s5 + $0xa8] sm:$0xff]
  %v1496 = vld [vmem:[%s5 + $0xb0] sm:$0xff]
  %v1497 = vld [vmem:[%s5 + $0xb8] sm:$0xff]
  %v1498 = vld [vmem:[%s5 + $0xc0] sm:$0xff]
  %v1499 = vld [vmem:[%s5 + $0xc8] sm:$0xff]
  %v1500 = vld [vmem:[%s5 + $0xd0] sm:$0xff]
  %v1501 = vld [vmem:[%s5 + $0xd8] sm:$0xff]
  %v1502 = vld [vmem:[%s5 + $0xe0] sm:$0xff]
  %v1503 = vld [vmem:[%s5 + $0xe8] sm:$0xff]
  %v1505 = vsel %vm1347, %v1319, 0
  %1507 = vmatprep.subr.mxu0 0.0
  %1508 = vmatpush1.msra.mxu0 %v1494
  %1509 = vmatprep.subr.mxu0 0.0
  %1510 = vmatpush1.msra.mxu0 %v1495
  %1511 = vmatprep.subr.mxu0 0.0
  %1512 = vmatpush1.msra.mxu0 %v1496
  %1513 = vmatprep.subr.mxu0 0.0
  %1514 = vmatpush1.msra.mxu0 %v1497
  %1515 = vmatprep.subr.mxu0 0.0
  %1516 = vmatpush1.msra.mxu0 %v1498
  %1517 = vmatprep.subr.mxu0 0.0
  %1518 = vmatpush1.msra.mxu0 %v1499
  %1519 = vmatprep.subr.mxu0 0.0
  %1520 = vmatpush1.msra.mxu0 %v1500
  %1521 = vmatprep.subr.mxu0 0.0
  %1522 = vmatpush1.msra.mxu0 %v1501
  %1523 = vmatprep.subr.mxu0 0.0
  %1524 = vmatpush1.msra.mxu0 %v1502
  %1525 = vmatprep.subr.mxu0 0.0
  %1526 = vmatpush1.msra.mxu0 %v1503
  %1527 = vmatprep.subr.mxu0 0.0
  %1528 = vmatpush1.msra.mxu0 0.0
  %1529 = vmatprep.subr.mxu0 0.0
  %1530 = vmatpush1.msra.mxu0 0.0
  %1531 = vmatprep.subr.mxu0 0.0
  %1532 = vmatpush1.msra.mxu0 0.0
  %1533 = vmatprep.subr.mxu0 0.0
  %1534 = vmatpush1.msra.mxu0 0.0
  %1535 = vmatprep.subr.mxu0 0.0
  %1536 = vmatpush1.msra.mxu0 0.0
  %1537 = vmatprep.subr.mxu0 0.0
  %1538 = vmatpush1.msra.mxu0 0.0
  %1539 = vmatprep.subr.mxu0 0.0
  %1540 = vmatpush1.msra.mxu0 0.0
  %1541 = vmatprep.subr.mxu0 0.0
  %1542 = vmatpush1.msra.mxu0 0.0
  %1543 = vmatprep.subr.mxu0 0.0
  %1544 = vmatpush1.msra.mxu0 0.0
  %1545 = vmatprep.subr.mxu0 0.0
  %1546 = vmatpush1.msra.mxu0 0.0
  %1547 = vmatprep.subr.mxu0 0.0
  %1548 = vmatpush1.msra.mxu0 0.0
  %1549 = vmatprep.subr.mxu0 0.0
  %1550 = vmatpush1.msra.mxu0 0.0
  %1551 = vmatprep.subr.mxu0 0.0
  %1552 = vmatpush1.msra.mxu0 0.0
  %1553 = vmatprep.subr.mxu0 0.0
  %1554 = vmatpush1.msra.mxu0 0.0
  %1555 = vmatprep.subr.mxu0 0.0
  %1556 = vmatpush1.msra.mxu0 0.0
  %1557 = vmatprep.subr.mxu0 0.0
  %1558 = vmatpush1.msra.mxu0 0.0
  %1559 = vmatprep.subr.mxu0 0.0
  %1560 = vmatpush1.msra.mxu0 0.0
  %1561 = vmatprep.subr.mxu0 0.0
  %1562 = vmatpush1.msra.mxu0 0.0
  %1563 = vmatprep.subr.mxu0 0.0
  %1564 = vmatpush1.msra.mxu0 0.0
  %1565 = vmatprep.subr.mxu0 0.0
  %1566 = vmatpush1.msra.mxu0 0.0
  %1567 = vmatprep.subr.mxu0 0.0
  %1568 = vmatpush1.msra.mxu0 0.0
  %1569 = vmatprep.subr.mxu0 0.0
  %1570 = vmatpush1.msra.mxu0 0.0
  %1571 = vmatprep.mubr.f32.mxu0 0.0
  %1572 = vmatmul.mubr.f32.gmra.mrb[0].mxu0 %v1505
  %v1573 = vpop.f32.mrb[0].mxu0
  %v1574 = vadd.f32 0.0, %v1573
  %v1575 = vpop.f32.mrb[0].mxu0
  %1576 = vdwg.mxu0
  %v1577 = vadd.f32 %v1491, %v1574
  %v1578 = vld [vmem:[%s5 + $0xf0] sm:$0xff]
  %v1579 = vld [vmem:[%s5 + $0xf8] sm:$0xff]
  %v1580 = vld [vmem:[%s5 + $0x100] sm:$0xff]
  %v1581 = vld [vmem:[%s5 + $0x108] sm:$0xff]
  %v1582 = vld [vmem:[%s5 + $0x110] sm:$0xff]
  %v1583 = vld [vmem:[%s5 + $0x118] sm:$0xff]
  %v1584 = vld [vmem:[%s5 + $0x120] sm:$0xff]
  %v1585 = vld [vmem:[%s5 + $0x128] sm:$0xff]
  %v1586 = vld [vmem:[%s5 + $0x130] sm:$0xff]
  %v1587 = vld [vmem:[%s5 + $0x138] sm:$0xff]
  %v1589 = vsel %vm1347, %v1324, 0
  %1591 = vmatprep.subr.mxu0 0.0
  %1592 = vmatpush1.msra.mxu0 %v1578
  %1593 = vmatprep.subr.mxu0 0.0
  %1594 = vmatpush1.msra.mxu0 %v1579
  %1595 = vmatprep.subr.mxu0 0.0
  %1596 = vmatpush1.msra.mxu0 %v1580
  %1597 = vmatprep.subr.mxu0 0.0
  %1598 = vmatpush1.msra.mxu0 %v1581
  %1599 = vmatprep.subr.mxu0 0.0
  %1600 = vmatpush1.msra.mxu0 %v1582
  %1601 = vmatprep.subr.mxu0 0.0
  %1602 = vmatpush1.msra.mxu0 %v1583
  %1603 = vmatprep.subr.mxu0 0.0
  %1604 = vmatpush1.msra.mxu0 %v1584
  %1605 = vmatprep.subr.mxu0 0.0
  %1606 = vmatpush1.msra.mxu0 %v1585
  %1607 = vmatprep.subr.mxu0 0.0
  %1608 = vmatpush1.msra.mxu0 %v1586
  %1609 = vmatprep.subr.mxu0 0.0
  %1610 = vmatpush1.msra.mxu0 %v1587
  %1611 = vmatprep.subr.mxu0 0.0
  %1612 = vmatpush1.msra.mxu0 0.0
  %1613 = vmatprep.subr.mxu0 0.0
  %1614 = vmatpush1.msra.mxu0 0.0
  %1615 = vmatprep.subr.mxu0 0.0
  %1616 = vmatpush1.msra.mxu0 0.0
  %1617 = vmatprep.subr.mxu0 0.0
  %1618 = vmatpush1.msra.mxu0 0.0
  %1619 = vmatprep.subr.mxu0 0.0
  %1620 = vmatpush1.msra.mxu0 0.0
  %1621 = vmatprep.subr.mxu0 0.0
  %1622 = vmatpush1.msra.mxu0 0.0
  %1623 = vmatprep.subr.mxu0 0.0
  %1624 = vmatpush1.msra.mxu0 0.0
  %1625 = vmatprep.subr.mxu0 0.0
  %1626 = vmatpush1.msra.mxu0 0.0
  %1627 = vmatprep.subr.mxu0 0.0
  %1628 = vmatpush1.msra.mxu0 0.0
  %1629 = vmatprep.subr.mxu0 0.0
  %1630 = vmatpush1.msra.mxu0 0.0
  %1631 = vmatprep.subr.mxu0 0.0
  %1632 = vmatpush1.msra.mxu0 0.0
  %1633 = vmatprep.subr.mxu0 0.0
  %1634 = vmatpush1.msra.mxu0 0.0
  %1635 = vmatprep.subr.mxu0 0.0
  %1636 = vmatpush1.msra.mxu0 0.0
  %1637 = vmatprep.subr.mxu0 0.0
  %1638 = vmatpush1.msra.mxu0 0.0
  %1639 = vmatprep.subr.mxu0 0.0
  %1640 = vmatpush1.msra.mxu0 0.0
  %1641 = vmatprep.subr.mxu0 0.0
  %1642 = vmatpush1.msra.mxu0 0.0
  %1643 = vmatprep.subr.mxu0 0.0
  %1644 = vmatpush1.msra.mxu0 0.0
  %1645 = vmatprep.subr.mxu0 0.0
  %1646 = vmatpush1.msra.mxu0 0.0
  %1647 = vmatprep.subr.mxu0 0.0
  %1648 = vmatpush1.msra.mxu0 0.0
  %1649 = vmatprep.subr.mxu0 0.0
  %1650 = vmatpush1.msra.mxu0 0.0
  %1651 = vmatprep.subr.mxu0 0.0
  %1652 = vmatpush1.msra.mxu0 0.0
  %1653 = vmatprep.subr.mxu0 0.0
  %1654 = vmatpush1.msra.mxu0 0.0
  %1655 = vmatprep.mubr.f32.mxu0 0.0
  %1656 = vmatmul.mubr.f32.gmra.mrb[0].mxu0 %v1589
  %v1657 = vpop.f32.mrb[0].mxu0
  %v1658 = vadd.f32 0.0, %v1657
  %v1659 = vpop.f32.mrb[0].mxu0
  %1660 = vdwg.mxu0
  %v1661 = vadd.f32 %v1577, %v1658
  %v1662 = vld [vmem:[%s6] sm:$0x1]
  %v1664 = vlaneseq
  %v1665 = vshrl.u32 %v1664, 7
  %v1666 = vsub.s32 0, %v1665
  %v1667 = vrot.slane %v1662, %v1666
  %v1669 = vadd.f32 %v1661, %v1667
  %v1670 = vmax.f32 %v1669, 0.0
  %v1671 = vld [vmem:[%s7] sm:$0xff]
  %v1672 = vld [vmem:[%s7 + $0x8] sm:$0xff]
  %v1673 = vld [vmem:[%s7 + $0x10] sm:$0xff]
  %v1674 = vld [vmem:[%s7 + $0x18] sm:$0xff]
  %v1675 = vld [vmem:[%s8] sm:$0x1]
  %v1677 = vlaneseq
  %v1678 = vshrl.u32 %v1677, 7
  %v1679 = vsub.s32 0, %v1678
  %v1680 = vrot.slane %v1675, %v1679
  %vm1682 = vcmask 261120
  %v1684 = vsel %vm1682, %v1670, 0
  %1686 = vmatprep.subr.mxu0 0.0
  %1687 = vmatpush1.msra.mxu0 %v1671
  %1688 = vmatprep.subr.mxu0 0.0
  %1689 = vmatpush1.msra.mxu0 %v1672
  %1690 = vmatprep.subr.mxu0 0.0
  %1691 = vmatpush1.msra.mxu0 %v1673
  %1692 = vmatprep.subr.mxu0 0.0
  %1693 = vmatpush1.msra.mxu0 %v1674
  %1694 = vmatprep.subr.mxu0 0.0
  %1695 = vmatpush1.msra.mxu0 0.0
  %1696 = vmatprep.subr.mxu0 0.0
  %1697 = vmatpush1.msra.mxu0 0.0
  %1698 = vmatprep.subr.mxu0 0.0
  %1699 = vmatpush1.msra.mxu0 0.0
  %1700 = vmatprep.subr.mxu0 0.0
  %1701 = vmatpush1.msra.mxu0 0.0
  %1702 = vmatprep.subr.mxu0 0.0
  %1703 = vmatpush1.msra.mxu0 0.0
  %1704 = vmatprep.subr.mxu0 0.0
  %1705 = vmatpush1.msra.mxu0 0.0
  %1706 = vmatprep.subr.mxu0 0.0
  %1707 = vmatpush1.msra.mxu0 0.0
  %1708 = vmatprep.subr.mxu0 0.0
  %1709 = vmatpush1.msra.mxu0 0.0
  %1710 = vmatprep.subr.mxu0 0.0
  %1711 = vmatpush1.msra.mxu0 0.0
  %1712 = vmatprep.subr.mxu0 0.0
  %1713 = vmatpush1.msra.mxu0 0.0
  %1714 = vmatprep.subr.mxu0 0.0
  %1715 = vmatpush1.msra.mxu0 0.0
  %1716 = vmatprep.subr.mxu0 0.0
  %1717 = vmatpush1.msra.mxu0 0.0
  %1718 = vmatprep.subr.mxu0 0.0
  %1719 = vmatpush1.msra.mxu0 0.0
  %1720 = vmatprep.subr.mxu0 0.0
  %1721 = vmatpush1.msra.mxu0 0.0
  %1722 = vmatprep.subr.mxu0 0.0
  %1723 = vmatpush1.msra.mxu0 0.0
  %1724 = vmatprep.subr.mxu0 0.0
  %1725 = vmatpush1.msra.mxu0 0.0
  %1726 = vmatprep.subr.mxu0 0.0
  %1727 = vmatpush1.msra.mxu0 0.0
  %1728 = vmatprep.subr.mxu0 0.0
  %1729 = vmatpush1.msra.mxu0 0.0
  %1730 = vmatprep.subr.mxu0 0.0
  %1731 = vmatpush1.msra.mxu0 0.0
  %1732 = vmatprep.subr.mxu0 0.0
  %1733 = vmatpush1.msra.mxu0 0.0
  %1734 = vmatprep.subr.mxu0 0.0
  %1735 = vmatpush1.msra.mxu0 0.0
  %1736 = vmatprep.subr.mxu0 0.0
  %1737 = vmatpush1.msra.mxu0 0.0
  %1738 = vmatprep.subr.mxu0 0.0
  %1739 = vmatpush1.msra.mxu0 0.0
  %1740 = vmatprep.subr.mxu0 0.0
  %1741 = vmatpush1.msra.mxu0 0.0
  %1742 = vmatprep.subr.mxu0 0.0
  %1743 = vmatpush1.msra.mxu0 0.0
  %1744 = vmatprep.subr.mxu0 0.0
  %1745 = vmatpush1.msra.mxu0 0.0
  %1746 = vmatprep.subr.mxu0 0.0
  %1747 = vmatpush1.msra.mxu0 0.0
  %1748 = vmatprep.subr.mxu0 0.0
  %1749 = vmatpush1.msra.mxu0 0.0
  %1750 = vmatprep.mubr.f32.mxu0 0.0
  %1751 = vmatmul.mubr.f32.gmra.mrb[0].mxu0 %v1684
  %v1752 = vpop.f32.mrb[0].mxu0
  %v1753 = vadd.f32 %v1680, %v1752
  %v1754 = vpop.f32.mrb[0].mxu0
  %1755 = vdwg.mxu0
  %vm1756 = vcmask 23552
  %v1757 = vsel %vm1756, %v1753, -inf
  %1758 = vmax.xlane.f32.xlu0 %v1757
  %v1759 = vpop.xlane.xlu0 %1758
  %v1760 = vsub.f32 %v1753, %v1759
  %v1761 = vmul.f32 %v1760, 1.442695
  %v1762 = vpow.pop %v1761
  %v1763 = vsel %vm1756, %v1762, 0.0
  %1764 = vadd.xlane.f32.xlu0 %v1763
  %v1765 = vpop.xlane.xlu0 %1764
  %v1766 = vlog2.pop %v1765
  %v1767 = vmul.f32 %v1766, 0.6931472
  %v1768 = vsub.f32 %v1760, %v1767
  %1769 = vst.msk [vmem:[%s9] sm:$0xff] %vm1756, %v1768
  // Predicated region
  $region38: #{tception_forward.1} parent=0 // pred_check
    _
  $region39: #{tception_forward.1} parent=0 // pred_check_branch
    %1771 = sbr.rel (0) target = $region41
  $region40: #{tception_forward.1} parent=0 // pred_region
    _
  $region41: #{tception_forward.1} parent=0 // pred_fallthru
    _
  // Predicated region
  $region42: #{tception_forward.1} parent=0 // pred_check
    _
  $region43: #{tception_forward.1} parent=0 // pred_check_branch
    %1773 = sbr.rel (0) target = $region45
  $region44: #{tception_forward.1} parent=0 // pred_region
    _
  $region45: #{tception_forward.1} parent=0 // pred_fallthru
    _

</llo_original>
